<compile_context>
chip_gen: v6e
topology: v6e:2x2x1
jax: 0.10.0
libtpu: 0.0.40
codegen_flags: <defaults>
</compile_context>

<pallas_src>
import numpy as np
import jax
import jax.numpy as jnp
from jax.experimental import pallas as pl
from jax.experimental.pallas import tpu as pltpu

_NMID = 10   # V: mid joints
_NBODY = 5   # W: body parts


# ---------------------------------------------------------------------------
# Parameter construction (deterministic, mirrors the PyTorch __init__)
# ---------------------------------------------------------------------------
def make_pool_weight() -> jnp.ndarray:
    LeftLeg = [0, 1, 4]
    RightLeg = [2, 3, 4]
    Spine = [4, 5]
    LeftArm = [6, 7, 4]
    RightArm = [8, 9, 4]
    w = np.zeros((_NMID, _NBODY), dtype=np.float32)
    w[LeftLeg, 0] = 1.0
    w[RightLeg, 1] = 1.0
    w[Spine, 2] = 1.0
    w[LeftArm, 3] = 1.0
    w[RightArm, 4] = 1.0
    scale = np.sum(w, axis=0, keepdims=True)
    w = w / scale
    return jnp.asarray(w)


# ---------------------------------------------------------------------------
# Pallas kernel: dense slab (tm, G*V) @ block-diagonal weight (G*V, G*W)
# ---------------------------------------------------------------------------
def _pool_kernel(x_ref, w_ref, o_ref):
    # x_ref: (tm, G*V) f32.  w_ref: (G*V, G*W) f32 block-diagonal weight,
    # VMEM-resident (constant index_map => DMA'd once for the whole grid).
    # o_ref: (tm, G*W) f32, lane-dense unmasked stores for G in {64, 128}.
    acc = jnp.dot(x_ref[...], w_ref[...], preferred_element_type=jnp.float32)
    o_ref[...] = acc if acc.dtype == o_ref.dtype else acc.astype(o_ref.dtype)


# ---------------------------------------------------------------------------
# Heuristics
# ---------------------------------------------------------------------------
def _max_group() -> int:
    """Per-generation cap on G (the lane-densification factor).

    The block-diagonal weight inflates MXU flops by ~G; v6e/v7x have enough
    MXU headroom to stay HBM-bound at G=128, but v5e's smaller MXU flips
    compute-bound around G>=64, so cap it at 32 there.
    """
    try:
        kind = jax.devices()[0].device_kind.lower()
    except Exception:
        return 64
    if "v5 lite" in kind or "v5e" in kind or "v5lite" in kind:
        return 32
    return 128


def _pick_group(m: int, g_max: int):
    """Largest G in {128,64,32,16,8} (<= g_max) with M % G == 0, else None."""
    for g in (128, 64, 32, 16, 8):
        if g <= g_max and m % g == 0:
            return g
    return None


def _choose_slab_tile(r: int, g: int) -> int:
    """Slab rows per grid step (one slab row = g original rows)."""
    bytes_per_row = g * (_NMID + _NBODY) * 4        # useful HBM payload / slab row
    # Cap: ~2 MiB of useful payload per step -- far past the ~0.35 us per-step
    # pipeline overhead while keeping double-buffered VMEM use to a few MiB.
    tm = max(8, (2 << 20) // bytes_per_row)
    # Prefer 4-8 grid steps (real pipelining + even-ish split across v7x's two
    # TensorCores), but never shrink a step below ~512 KiB of payload.
    affordable_steps = (r * bytes_per_row) // (512 << 10)
    want_steps = min(8, max(1, affordable_steps))
    if want_steps > 1:
        tm = min(tm, pl.cdiv(r, want_steps))
    if tm >= r:
        return r                                    # single full-height block
    return max(8, (tm // 8) * 8)                    # 8-sublane granule


# ---------------------------------------------------------------------------
# Pallas wrapper
# ---------------------------------------------------------------------------
def pool_mid_to_bodypart_pallas(x: jnp.ndarray, weight: jnp.ndarray) -> jnp.ndarray:
    """x: (N, C, T, 10) float32, weight: (10, 5) float32 -> (N, C, T, 5)."""
    if x.dtype != jnp.float32:
        raise TypeError("pool_mid_to_bodypart_pallas assumes float32 activations "
                        "(bf16 would change the sublane granule from 8 to 16).")
    n, c, t, v = x.shape
    vw, w_out = weight.shape
    assert v == vw == _NMID and w_out == _NBODY

    m = n * c * t
    g = _pick_group(m, _max_group())
    if g is None:
        # M not a multiple of 8: the free (M/G, G*V) reshape is impossible.
        # Only happens for tiny/awkward shapes where XLA fusion wins anyway.
        # TODO(synk): a lane-sparse cdiv-grid Pallas path could cover this too.
        return jnp.einsum("nctv,vw->nctw", x, weight)

    r = m // g
    # Free, contiguous (row-major) reshapes -- zero data movement.
    x_slab = x.reshape(r, g * v)
    # Block-diagonal weight: out_slab = x_slab @ w_bd reproduces the per-group
    # (10 -> 5) pooling.  ~3.3 MiB at G=128; fetched once and kept in VMEM.
    w_bd = jnp.kron(jnp.eye(g, dtype=weight.dtype), weight)

    tm = _choose_slab_tile(r, g)
    grid = (pl.cdiv(r, tm),)   # ragged last block is masked by Pallas (no pad)

    out_slab = pl.pallas_call(
        _pool_kernel,
        out_shape=jax.ShapeDtypeStruct((r, g * w_out), x.dtype),
        grid=grid,
        in_specs=[
            pl.BlockSpec((tm, g * v), lambda i: (i, 0)),
            # Constant index_map: block-diag weight DMA'd once, VMEM-resident.
            pl.BlockSpec((g * v, g * w_out), lambda i: (0, 0)),
        ],
        out_specs=pl.BlockSpec((tm, g * w_out), lambda i: (i, 0)),
        compiler_params=pltpu.CompilerParams(
            dimension_semantics=("parallel",),
            vmem_limit_bytes=32 * 1024 * 1024,
        ),
        cost_estimate=pl.CostEstimate(
            flops=2 * r * (g * v) * (g * w_out),
            transcendentals=0,
            bytes_accessed=4 * (m * (v + w_out) + (g * v) * (g * w_out)),
        ),
    )(x_slab, w_bd)

    # Free contiguous reshape back to (N, C, T, 5).
    return out_slab.reshape(n, c, t, w_out)


def pool_mid_to_bodypart(x: jnp.ndarray, weight: jnp.ndarray) -> jnp.ndarray:
    """Production dispatcher: tiny / awkward workloads go straight to XLA
    (launch + one-grid-step overhead dwarfs the data movement, and XLA can fuse
    the 10->5 pooling into producers/consumers for free)."""
    m = x.shape[0] * x.shape[1] * x.shape[2]
    if m < 4096 or _pick_group(m, _max_group()) is None:
        return jnp.einsum("nctv,vw->nctw", x, weight)
    return pool_mid_to_bodypart_pallas(x, weight)


# ---------------------------------------------------------------------------
# Reference (pure JAX) for sanity check
# ---------------------------------------------------------------------------
def pool_ref(x, weight):
    return jnp.einsum("nctv,vw->nctw", x, weight)


if __name__ == "__main__":
    weight = make_pool_weight()  # (10, 5), fixed pooling matrix

    # Small shape consistent with the module (V must be the 10 mid joints):
    # M = 2*4*16 = 128 -> single-block dense Pallas path.
    x = jax.random.normal(jax.random.PRNGKey(0), (2, 4, 16, 10), dtype=jnp.float32)
    out = jax.block_until_ready(pool_mid_to_bodypart_pallas(x, weight))
    np.testing.assert_allclose(
        np.asarray(out), np.asarray(pool_ref(x, weight)), rtol=1e-5, atol=1e-5
    )

    # Larger case exercising the multi-step grid + ragged last block
    # (M = 2*4*4480 = 35840 rows; no pad/slice copies anywhere).
    x2 = jax.random.normal(jax.random.PRNGKey(1), (2, 4, 4480, 10), dtype=jnp.float32)
    out2 = jax.block_until_ready(pool_mid_to_bodypart_pallas(x2, weight))
    np.testing.assert_allclose(
        np.asarray(out2), np.asarray(pool_ref(x2, weight)), rtol=1e-5, atol=1e-5
    )

    # Awkward M (not a multiple of 8) goes through the dispatcher's XLA fallback.
    x3 = jax.random.normal(jax.random.PRNGKey(2), (1, 3, 7, 10), dtype=jnp.float32)
    out3 = jax.block_until_ready(pool_mid_to_bodypart(x3, weight))
    np.testing.assert_allclose(
        np.asarray(out3), np.asarray(pool_ref(x3, weight)), rtol=1e-5, atol=1e-5
    )

    print("KERNEL_OK")
</pallas_src>

<mosaic_0001>
module attributes {stable_mosaic.version = 11 : i64} {
  func.func @_pool_kernel(%arg0: i32, %arg1: memref<1x1280xf32, #tpu.memory_space<vmem>>, %arg2: memref<1280x640xf32, #tpu.memory_space<vmem>>, %arg3: memref<1x640xf32, #tpu.memory_space<vmem>>) attributes {dimension_semantics = [#tpu.dimension_semantics<parallel>], iteration_bounds = array<i64: 1>, scalar_prefetch = 0 : i64, scratch_operands = 0 : i64, tpu.core_type = #tpu.core_type<tc>, window_params = [{transform_indices = @transform_0, window_bounds = array<i64: 1, 1280>}, {pipeline_mode = #tpu.pipeline_mode<synchronous>, transform_indices = @transform_1, window_bounds = array<i64: 1280, 640>}, {transform_indices = @transform_2, window_bounds = array<i64: 1, 640>}]} {
    %c0 = arith.constant 0 : index
    %c0_0 = arith.constant 0 : index
    %0 = vector.load %arg1[%c0, %c0_0] : memref<1x1280xf32, #tpu.memory_space<vmem>>, vector<1x1280xf32>
    %c0_1 = arith.constant 0 : index
    %c0_2 = arith.constant 0 : index
    %1 = vector.load %arg2[%c0_1, %c0_2] : memref<1280x640xf32, #tpu.memory_space<vmem>>, vector<1280x640xf32>
    %cst = arith.constant dense<0.000000e+00> : vector<1x640xf32>
    %2 = tpu.matmul %0, %1, %cst {dimension_numbers = #tpu.dot_dimension_numbers<[1], [0], [0], [1], [0, 0, 1, 1], [], []>} : vector<1x1280xf32>, vector<1280x640xf32>, vector<1x640xf32> -> vector<1x640xf32>
    %c0_3 = arith.constant 0 : index
    %c0_4 = arith.constant 0 : index
    %3 = vector.load %arg3[%c0_3, %c0_4] : memref<1x640xf32, #tpu.memory_space<vmem>>, vector<1x640xf32>
    tpu.vector_store %arg3[%c0_3, %c0_4], %2 {strides = array<i32>} : memref<1x640xf32, #tpu.memory_space<vmem>>, vector<1x640xf32>,
    return
  }
  func.func @transform_0(%arg0: i32) -> (i32, i32) {
    %c0_i32 = arith.constant 0 : i32
    %c0_i32_0 = arith.constant 0 : i32
    return %arg0, %c0_i32 : i32, i32
  }
  func.func @transform_1(%arg0: i32) -> (i32, i32) {
    %c0_i32 = arith.constant 0 : i32
    %c0_i32_0 = arith.constant 0 : i32
    %c0_i32_1 = arith.constant 0 : i32
    return %c0_i32, %c0_i32_0 : i32, i32
  }
  func.func @transform_2(%arg0: i32) -> (i32, i32) {
    %c0_i32 = arith.constant 0 : i32
    %c0_i32_0 = arith.constant 0 : i32
    return %arg0, %c0_i32 : i32, i32
  }
}

</mosaic_0001>

<llo_original>
// kernel: tpu_custom_call.1
$region0: #{tpu_custom_call.1}
  #allocation0 [shape = 'u32[]', space=smem, size = 0x4, offset = 0x4, fixed_abs, tag = 'smem constant byte address 0x4 - core index']
  #allocation1 [shape = 'u32[144,128]{1,0:T(1,128)}', space=vmem, size = 0x12000, scoped, tag = 'internal scratch']
  %s0 = inlined_call_operand.hbm [shape: f32[1,1280], index: 0, kind: input, shape index: {}]
  %s1 = inlined_call_operand.hbm [shape: f32[1280,640], index: 1, kind: input, shape index: {}]
  %s2 = inlined_call_operand.hbm [shape: f32[1,640], index: 2, kind: output, shape index: {}]
  %s3 = sld [smem:[#allocation0]]
  $region26: #{tpu_custom_call.1} parent=0
    _
  %s5 = ssub.s32 1, %s3
  %s6 = scalar_select 0, %s5, %s3
  $region1: #{tpu_custom_call.1} parent=0
    #allocation2 [shape = 'u8[5120]{0}', space=vmem, size = 0x1400, scoped, tag = 'input window, operand 0, single buffered']
    #allocation3 [shape = 's32[1]{0}', space=sflag, size = 0x4, scoped, tag = 'scoped memory for tpu_custom_call.1']
    #allocation4 [shape = 's32[1]{0}', space=sflag, size = 0x4, scoped, tag = 'scoped memory for tpu_custom_call.1']
    #allocation5 [shape = 'u8[3276800]{0}', space=vmem, size = 0x320000, scoped, tag = 'input window, operand 1, single buffered']
    #allocation6 [shape = 's32[1]{0}', space=sflag, size = 0x4, scoped, tag = 'scoped memory for tpu_custom_call.1']
    #allocation7 [shape = 'u8[2560]{0}', space=vmem, size = 0xc00, scoped, tag = 'output window, operand 0, single buffered']
    %7 = vsyncpa [#allocation3], 0
    %8 = vsyncpa [#allocation6], 0
    %9 = vsyncpa [#allocation4], 0
    // Predicated region
    $region2: #{tpu_custom_call.1} parent=1 // pred_check
      _
    $region3: #{tpu_custom_call.1} parent=1 // pred_check_branch
      %11 = sbr.rel (0) target = $region5
    $region4: #{tpu_custom_call.1} parent=1 // pred_region
      %s13 = ssub.s32 160, 160
      %14 = vsyncadd [#allocation3], %s13
      %s16 = sshll.u32 [#allocation2], 4
      %s17 = int_to_ptr.vmem [resolvable:$true] %s16
      %19 = dma.hbm_to_vmem [thread:$0]  %s0, 160, %s17, [#allocation3]
    $region5: #{tpu_custom_call.1} parent=1 // pred_fallthru
      _
    // Predicated region
    $region6: #{tpu_custom_call.1} parent=1 // pred_check
      _
    $region7: #{tpu_custom_call.1} parent=1 // pred_check_branch
      %21 = sbr.rel (0) target = $region9
    $region8: #{tpu_custom_call.1} parent=1 // pred_region
      %s23 = ssub.s32 102400, 102400
      %24 = vsyncadd [#allocation6], %s23
      %s25 = sshll.u32 [#allocation5], 4
      %s26 = int_to_ptr.vmem [resolvable:$true] %s25
      %31 = dma.hbm_to_vmem [thread:$0]  %s1, 102400, %s26, [#allocation6], 640, 640, 40
    $region9: #{tpu_custom_call.1} parent=1 // pred_fallthru
      _
    // Predicated region
    $region10: #{tpu_custom_call.1} parent=1 // pred_check
      _
    $region11: #{tpu_custom_call.1} parent=1 // pred_check_branch
      %33 = sbr.rel (0) target = $region13
    $region12: #{tpu_custom_call.1} parent=1 // pred_region
      %34 = dma.done [#allocation3], 160
    $region13: #{tpu_custom_call.1} parent=1 // pred_fallthru
      _
    // Predicated region
    $region14: #{tpu_custom_call.1} parent=1 // pred_check
      _
    $region15: #{tpu_custom_call.1} parent=1 // pred_check_branch
      %36 = sbr.rel (0) target = $region17
    $region16: #{tpu_custom_call.1} parent=1 // pred_region
      %37 = dma.done [#allocation6], 102400
    $region17: #{tpu_custom_call.1} parent=1 // pred_fallthru
      _
    %v38 = vld [vmem:[#allocation2] sm:$0xff]
    %v39 = vld [vmem:[#allocation2 + $0x8] sm:$0x3]
    %v40 = vld [vmem:[#allocation5] sm:$0xff]
    %v41 = vld [vmem:[#allocation5 + $0x8] sm:$0xff]
    %v42 = vld [vmem:[#allocation5 + $0x10] sm:$0xff]
    %v43 = vld [vmem:[#allocation5 + $0x18] sm:$0xff]
    %v44 = vld [vmem:[#allocation5 + $0x20] sm:$0xff]
    %v45 = vld [vmem:[#allocation5 + $0x28] sm:$0xff]
    %v46 = vld [vmem:[#allocation5 + $0x30] sm:$0xff]
    %v47 = vld [vmem:[#allocation5 + $0x38] sm:$0xff]
    %v48 = vld [vmem:[#allocation5 + $0x40] sm:$0xff]
    %v49 = vld [vmem:[#allocation5 + $0x48] sm:$0xff]
    %v50 = vld [vmem:[#allocation5 + $0x50] sm:$0xff]
    %v51 = vld [vmem:[#allocation5 + $0x58] sm:$0xff]
    %v52 = vld [vmem:[#allocation5 + $0x60] sm:$0xff]
    %v53 = vld [vmem:[#allocation5 + $0x68] sm:$0xff]
    %v54 = vld [vmem:[#allocation5 + $0x70] sm:$0xff]
    %v55 = vld [vmem:[#allocation5 + $0x78] sm:$0xff]
    %v56 = vld [vmem:[#allocation5 + $0x80] sm:$0xff]
    %v57 = vld [vmem:[#allocation5 + $0x88] sm:$0xff]
    %v58 = vld [vmem:[#allocation5 + $0x90] sm:$0xff]
    %v59 = vld [vmem:[#allocation5 + $0x98] sm:$0xff]
    %v60 = vld [vmem:[#allocation5 + $0xa0] sm:$0xff]
    %v61 = vld [vmem:[#allocation5 + $0xa8] sm:$0xff]
    %v62 = vld [vmem:[#allocation5 + $0xb0] sm:$0xff]
    %v63 = vld [vmem:[#allocation5 + $0xb8] sm:$0xff]
    %v64 = vld [vmem:[#allocation5 + $0xc0] sm:$0xff]
    %v65 = vld [vmem:[#allocation5 + $0xc8] sm:$0xff]
    %v66 = vld [vmem:[#allocation5 + $0xd0] sm:$0xff]
    %v67 = vld [vmem:[#allocation5 + $0xd8] sm:$0xff]
    %v68 = vld [vmem:[#allocation5 + $0xe0] sm:$0xff]
    %v69 = vld [vmem:[#allocation5 + $0xe8] sm:$0xff]
    %v70 = vld [vmem:[#allocation5 + $0xf0] sm:$0xff]
    %v71 = vld [vmem:[#allocation5 + $0xf8] sm:$0xff]
    %v72 = vld [vmem:[#allocation5 + $0x100] sm:$0xff]
    %v73 = vld [vmem:[#allocation5 + $0x108] sm:$0xff]
    %v74 = vld [vmem:[#allocation5 + $0x110] sm:$0xff]
    %v75 = vld [vmem:[#allocation5 + $0x118] sm:$0xff]
    %v76 = vld [vmem:[#allocation5 + $0x120] sm:$0xff]
    %v77 = vld [vmem:[#allocation5 + $0x128] sm:$0xff]
    %v78 = vld [vmem:[#allocation5 + $0x130] sm:$0xff]
    %v79 = vld [vmem:[#allocation5 + $0x138] sm:$0xff]
    %v80 = vld [vmem:[#allocation5 + $0x140] sm:$0xff]
    %v81 = vld [vmem:[#allocation5 + $0x148] sm:$0xff]
    %v82 = vld [vmem:[#allocation5 + $0x150] sm:$0xff]
    %v83 = vld [vmem:[#allocation5 + $0x158] sm:$0xff]
    %v84 = vld [vmem:[#allocation5 + $0x160] sm:$0xff]
    %v85 = vld [vmem:[#allocation5 + $0x168] sm:$0xff]
    %v86 = vld [vmem:[#allocation5 + $0x170] sm:$0xff]
    %v87 = vld [vmem:[#allocation5 + $0x178] sm:$0xff]
    %v88 = vld [vmem:[#allocation5 + $0x180] sm:$0xff]
    %v89 = vld [vmem:[#allocation5 + $0x188] sm:$0xff]
    %v90 = vld [vmem:[#allocation5 + $0x190] sm:$0xff]
    %v91 = vld [vmem:[#allocation5 + $0x198] sm:$0xff]
    %v92 = vld [vmem:[#allocation5 + $0x1a0] sm:$0xff]
    %v93 = vld [vmem:[#allocation5 + $0x1a8] sm:$0xff]
    %v94 = vld [vmem:[#allocation5 + $0x1b0] sm:$0xff]
    %v95 = vld [vmem:[#allocation5 + $0x1b8] sm:$0xff]
    %v96 = vld [vmem:[#allocation5 + $0x1c0] sm:$0xff]
    %v97 = vld [vmem:[#allocation5 + $0x1c8] sm:$0xff]
    %v98 = vld [vmem:[#allocation5 + $0x1d0] sm:$0xff]
    %v99 = vld [vmem:[#allocation5 + $0x1d8] sm:$0xff]
    %v100 = vld [vmem:[#allocation5 + $0x1e0] sm:$0xff]
    %v101 = vld [vmem:[#allocation5 + $0x1e8] sm:$0xff]
    %v102 = vld [vmem:[#allocation5 + $0x1f0] sm:$0xff]
    %v103 = vld [vmem:[#allocation5 + $0x1f8] sm:$0xff]
    %v104 = vld [vmem:[#allocation5 + $0x200] sm:$0xff]
    %v105 = vld [vmem:[#allocation5 + $0x208] sm:$0xff]
    %v106 = vld [vmem:[#allocation5 + $0x210] sm:$0xff]
    %v107 = vld [vmem:[#allocation5 + $0x218] sm:$0xff]
    %v108 = vld [vmem:[#allocation5 + $0x220] sm:$0xff]
    %v109 = vld [vmem:[#allocation5 + $0x228] sm:$0xff]
    %v110 = vld [vmem:[#allocation5 + $0x230] sm:$0xff]
    %v111 = vld [vmem:[#allocation5 + $0x238] sm:$0xff]
    %v112 = vld [vmem:[#allocation5 + $0x240] sm:$0xff]
    %v113 = vld [vmem:[#allocation5 + $0x248] sm:$0xff]
    %v114 = vld [vmem:[#allocation5 + $0x250] sm:$0xff]
    %v115 = vld [vmem:[#allocation5 + $0x258] sm:$0xff]
    %v116 = vld [vmem:[#allocation5 + $0x260] sm:$0xff]
    %v117 = vld [vmem:[#allocation5 + $0x268] sm:$0xff]
    %v118 = vld [vmem:[#allocation5 + $0x270] sm:$0xff]
    %v119 = vld [vmem:[#allocation5 + $0x278] sm:$0xff]
    %v120 = vld [vmem:[#allocation5 + $0x280] sm:$0xff]
    %v121 = vld [vmem:[#allocation5 + $0x288] sm:$0xff]
    %v122 = vld [vmem:[#allocation5 + $0x290] sm:$0xff]
    %v123 = vld [vmem:[#allocation5 + $0x298] sm:$0xff]
    %v124 = vld [vmem:[#allocation5 + $0x2a0] sm:$0xff]
    %v125 = vld [vmem:[#allocation5 + $0x2a8] sm:$0xff]
    %v126 = vld [vmem:[#allocation5 + $0x2b0] sm:$0xff]
    %v127 = vld [vmem:[#allocation5 + $0x2b8] sm:$0xff]
    %v128 = vld [vmem:[#allocation5 + $0x2c0] sm:$0xff]
    %v129 = vld [vmem:[#allocation5 + $0x2c8] sm:$0xff]
    %v130 = vld [vmem:[#allocation5 + $0x2d0] sm:$0xff]
    %v131 = vld [vmem:[#allocation5 + $0x2d8] sm:$0xff]
    %v132 = vld [vmem:[#allocation5 + $0x2e0] sm:$0xff]
    %v133 = vld [vmem:[#allocation5 + $0x2e8] sm:$0xff]
    %v134 = vld [vmem:[#allocation5 + $0x2f0] sm:$0xff]
    %v135 = vld [vmem:[#allocation5 + $0x2f8] sm:$0xff]
    %v136 = vld [vmem:[#allocation5 + $0x300] sm:$0xff]
    %v137 = vld [vmem:[#allocation5 + $0x308] sm:$0xff]
    %v138 = vld [vmem:[#allocation5 + $0x310] sm:$0xff]
    %v139 = vld [vmem:[#allocation5 + $0x318] sm:$0xff]
    %v140 = vld [vmem:[#allocation5 + $0x320] sm:$0xff]
    %v141 = vld [vmem:[#allocation5 + $0x328] sm:$0xff]
    %v142 = vld [vmem:[#allocation5 + $0x330] sm:$0xff]
    %v143 = vld [vmem:[#allocation5 + $0x338] sm:$0xff]
    %v144 = vld [vmem:[#allocation5 + $0x340] sm:$0xff]
    %v145 = vld [vmem:[#allocation5 + $0x348] sm:$0xff]
    %v146 = vld [vmem:[#allocation5 + $0x350] sm:$0xff]
    %v147 = vld [vmem:[#allocation5 + $0x358] sm:$0xff]
    %v148 = vld [vmem:[#allocation5 + $0x360] sm:$0xff]
    %v149 = vld [vmem:[#allocation5 + $0x368] sm:$0xff]
    %v150 = vld [vmem:[#allocation5 + $0x370] sm:$0xff]
    %v151 = vld [vmem:[#allocation5 + $0x378] sm:$0xff]
    %v152 = vld [vmem:[#allocation5 + $0x380] sm:$0xff]
    %v153 = vld [vmem:[#allocation5 + $0x388] sm:$0xff]
    %v154 = vld [vmem:[#allocation5 + $0x390] sm:$0xff]
    %v155 = vld [vmem:[#allocation5 + $0x398] sm:$0xff]
    %v156 = vld [vmem:[#allocation5 + $0x3a0] sm:$0xff]
    %v157 = vld [vmem:[#allocation5 + $0x3a8] sm:$0xff]
    %v158 = vld [vmem:[#allocation5 + $0x3b0] sm:$0xff]
    %v159 = vld [vmem:[#allocation5 + $0x3b8] sm:$0xff]
    %v160 = vld [vmem:[#allocation5 + $0x3c0] sm:$0xff]
    %v161 = vld [vmem:[#allocation5 + $0x3c8] sm:$0xff]
    %v162 = vld [vmem:[#allocation5 + $0x3d0] sm:$0xff]
    %v163 = vld [vmem:[#allocation5 + $0x3d8] sm:$0xff]
    %v164 = vld [vmem:[#allocation5 + $0x3e0] sm:$0xff]
    %v165 = vld [vmem:[#allocation5 + $0x3e8] sm:$0xff]
    %v166 = vld [vmem:[#allocation5 + $0x3f0] sm:$0xff]
    %v167 = vld [vmem:[#allocation5 + $0x3f8] sm:$0xff]
    %v168 = vld [vmem:[#allocation5 + $0x400] sm:$0xff]
    %v169 = vld [vmem:[#allocation5 + $0x408] sm:$0xff]
    %v170 = vld [vmem:[#allocation5 + $0x410] sm:$0xff]
    %v171 = vld [vmem:[#allocation5 + $0x418] sm:$0xff]
    %v172 = vld [vmem:[#allocation5 + $0x420] sm:$0xff]
    %v173 = vld [vmem:[#allocation5 + $0x428] sm:$0xff]
    %v174 = vld [vmem:[#allocation5 + $0x430] sm:$0xff]
    %v175 = vld [vmem:[#allocation5 + $0x438] sm:$0xff]
    %v176 = vld [vmem:[#allocation5 + $0x440] sm:$0xff]
    %v177 = vld [vmem:[#allocation5 + $0x448] sm:$0xff]
    %v178 = vld [vmem:[#allocation5 + $0x450] sm:$0xff]
    %v179 = vld [vmem:[#allocation5 + $0x458] sm:$0xff]
    %v180 = vld [vmem:[#allocation5 + $0x460] sm:$0xff]
    %v181 = vld [vmem:[#allocation5 + $0x468] sm:$0xff]
    %v182 = vld [vmem:[#allocation5 + $0x470] sm:$0xff]
    %v183 = vld [vmem:[#allocation5 + $0x478] sm:$0xff]
    %v184 = vld [vmem:[#allocation5 + $0x480] sm:$0xff]
    %v185 = vld [vmem:[#allocation5 + $0x488] sm:$0xff]
    %v186 = vld [vmem:[#allocation5 + $0x490] sm:$0xff]
    %v187 = vld [vmem:[#allocation5 + $0x498] sm:$0xff]
    %v188 = vld [vmem:[#allocation5 + $0x4a0] sm:$0xff]
    %v189 = vld [vmem:[#allocation5 + $0x4a8] sm:$0xff]
    %v190 = vld [vmem:[#allocation5 + $0x4b0] sm:$0xff]
    %v191 = vld [vmem:[#allocation5 + $0x4b8] sm:$0xff]
    %v192 = vld [vmem:[#allocation5 + $0x4c0] sm:$0xff]
    %v193 = vld [vmem:[#allocation5 + $0x4c8] sm:$0xff]
    %v194 = vld [vmem:[#allocation5 + $0x4d0] sm:$0xff]
    %v195 = vld [vmem:[#allocation5 + $0x4d8] sm:$0xff]
    %v196 = vld [vmem:[#allocation5 + $0x4e0] sm:$0xff]
    %v197 = vld [vmem:[#allocation5 + $0x4e8] sm:$0xff]
    %v198 = vld [vmem:[#allocation5 + $0x4f0] sm:$0xff]
    %v199 = vld [vmem:[#allocation5 + $0x4f8] sm:$0xff]
    %v200 = vld [vmem:[#allocation5 + $0x500] sm:$0xff]
    %v201 = vld [vmem:[#allocation5 + $0x508] sm:$0xff]
    %v202 = vld [vmem:[#allocation5 + $0x510] sm:$0xff]
    %v203 = vld [vmem:[#allocation5 + $0x518] sm:$0xff]
    %v204 = vld [vmem:[#allocation5 + $0x520] sm:$0xff]
    %v205 = vld [vmem:[#allocation5 + $0x528] sm:$0xff]
    %v206 = vld [vmem:[#allocation5 + $0x530] sm:$0xff]
    %v207 = vld [vmem:[#allocation5 + $0x538] sm:$0xff]
    %v208 = vld [vmem:[#allocation5 + $0x540] sm:$0xff]
    %v209 = vld [vmem:[#allocation5 + $0x548] sm:$0xff]
    %v210 = vld [vmem:[#allocation5 + $0x550] sm:$0xff]
    %v211 = vld [vmem:[#allocation5 + $0x558] sm:$0xff]
    %v212 = vld [vmem:[#allocation5 + $0x560] sm:$0xff]
    %v213 = vld [vmem:[#allocation5 + $0x568] sm:$0xff]
    %v214 = vld [vmem:[#allocation5 + $0x570] sm:$0xff]
    %v215 = vld [vmem:[#allocation5 + $0x578] sm:$0xff]
    %v216 = vld [vmem:[#allocation5 + $0x580] sm:$0xff]
    %v217 = vld [vmem:[#allocation5 + $0x588] sm:$0xff]
    %v218 = vld [vmem:[#allocation5 + $0x590] sm:$0xff]
    %v219 = vld [vmem:[#allocation5 + $0x598] sm:$0xff]
    %v220 = vld [vmem:[#allocation5 + $0x5a0] sm:$0xff]
    %v221 = vld [vmem:[#allocation5 + $0x5a8] sm:$0xff]
    %v222 = vld [vmem:[#allocation5 + $0x5b0] sm:$0xff]
    %v223 = vld [vmem:[#allocation5 + $0x5b8] sm:$0xff]
    %v224 = vld [vmem:[#allocation5 + $0x5c0] sm:$0xff]
    %v225 = vld [vmem:[#allocation5 + $0x5c8] sm:$0xff]
    %v226 = vld [vmem:[#allocation5 + $0x5d0] sm:$0xff]
    %v227 = vld [vmem:[#allocation5 + $0x5d8] sm:$0xff]
    %v228 = vld [vmem:[#allocation5 + $0x5e0] sm:$0xff]
    %v229 = vld [vmem:[#allocation5 + $0x5e8] sm:$0xff]
    %v230 = vld [vmem:[#allocation5 + $0x5f0] sm:$0xff]
    %v231 = vld [vmem:[#allocation5 + $0x5f8] sm:$0xff]
    %v232 = vld [vmem:[#allocation5 + $0x600] sm:$0xff]
    %v233 = vld [vmem:[#allocation5 + $0x608] sm:$0xff]
    %v234 = vld [vmem:[#allocation5 + $0x610] sm:$0xff]
    %v235 = vld [vmem:[#allocation5 + $0x618] sm:$0xff]
    %v236 = vld [vmem:[#allocation5 + $0x620] sm:$0xff]
    %v237 = vld [vmem:[#allocation5 + $0x628] sm:$0xff]
    %v238 = vld [vmem:[#allocation5 + $0x630] sm:$0xff]
    %v239 = vld [vmem:[#allocation5 + $0x638] sm:$0xff]
    %v240 = vld [vmem:[#allocation5 + $0x640] sm:$0xff]
    %v241 = vld [vmem:[#allocation5 + $0x648] sm:$0xff]
    %v242 = vld [vmem:[#allocation5 + $0x650] sm:$0xff]
    %v243 = vld [vmem:[#allocation5 + $0x658] sm:$0xff]
    %v244 = vld [vmem:[#allocation5 + $0x660] sm:$0xff]
    %v245 = vld [vmem:[#allocation5 + $0x668] sm:$0xff]
    %v246 = vld [vmem:[#allocation5 + $0x670] sm:$0xff]
    %v247 = vld [vmem:[#allocation5 + $0x678] sm:$0xff]
    %v248 = vld [vmem:[#allocation5 + $0x680] sm:$0xff]
    %v249 = vld [vmem:[#allocation5 + $0x688] sm:$0xff]
    %v250 = vld [vmem:[#allocation5 + $0x690] sm:$0xff]
    %v251 = vld [vmem:[#allocation5 + $0x698] sm:$0xff]
    %v252 = vld [vmem:[#allocation5 + $0x6a0] sm:$0xff]
    %v253 = vld [vmem:[#allocation5 + $0x6a8] sm:$0xff]
    %v254 = vld [vmem:[#allocation5 + $0x6b0] sm:$0xff]
    %v255 = vld [vmem:[#allocation5 + $0x6b8] sm:$0xff]
    %v256 = vld [vmem:[#allocation5 + $0x6c0] sm:$0xff]
    %v257 = vld [vmem:[#allocation5 + $0x6c8] sm:$0xff]
    %v258 = vld [vmem:[#allocation5 + $0x6d0] sm:$0xff]
    %v259 = vld [vmem:[#allocation5 + $0x6d8] sm:$0xff]
    %v260 = vld [vmem:[#allocation5 + $0x6e0] sm:$0xff]
    %v261 = vld [vmem:[#allocation5 + $0x6e8] sm:$0xff]
    %v262 = vld [vmem:[#allocation5 + $0x6f0] sm:$0xff]
    %v263 = vld [vmem:[#allocation5 + $0x6f8] sm:$0xff]
    %v264 = vld [vmem:[#allocation5 + $0x700] sm:$0xff]
    %v265 = vld [vmem:[#allocation5 + $0x708] sm:$0xff]
    %v266 = vld [vmem:[#allocation5 + $0x710] sm:$0xff]
    %v267 = vld [vmem:[#allocation5 + $0x718] sm:$0xff]
    %v268 = vld [vmem:[#allocation5 + $0x720] sm:$0xff]
    %v269 = vld [vmem:[#allocation5 + $0x728] sm:$0xff]
    %v270 = vld [vmem:[#allocation5 + $0x730] sm:$0xff]
    %v271 = vld [vmem:[#allocation5 + $0x738] sm:$0xff]
    %v272 = vld [vmem:[#allocation5 + $0x740] sm:$0xff]
    %v273 = vld [vmem:[#allocation5 + $0x748] sm:$0xff]
    %v274 = vld [vmem:[#allocation5 + $0x750] sm:$0xff]
    %v275 = vld [vmem:[#allocation5 + $0x758] sm:$0xff]
    %v276 = vld [vmem:[#allocation5 + $0x760] sm:$0xff]
    %v277 = vld [vmem:[#allocation5 + $0x768] sm:$0xff]
    %v278 = vld [vmem:[#allocation5 + $0x770] sm:$0xff]
    %v279 = vld [vmem:[#allocation5 + $0x778] sm:$0xff]
    %v280 = vld [vmem:[#allocation5 + $0x780] sm:$0xff]
    %v281 = vld [vmem:[#allocation5 + $0x788] sm:$0xff]
    %v282 = vld [vmem:[#allocation5 + $0x790] sm:$0xff]
    %v283 = vld [vmem:[#allocation5 + $0x798] sm:$0xff]
    %v284 = vld [vmem:[#allocation5 + $0x7a0] sm:$0xff]
    %v285 = vld [vmem:[#allocation5 + $0x7a8] sm:$0xff]
    %v286 = vld [vmem:[#allocation5 + $0x7b0] sm:$0xff]
    %v287 = vld [vmem:[#allocation5 + $0x7b8] sm:$0xff]
    %v288 = vld [vmem:[#allocation5 + $0x7c0] sm:$0xff]
    %v289 = vld [vmem:[#allocation5 + $0x7c8] sm:$0xff]
    %v290 = vld [vmem:[#allocation5 + $0x7d0] sm:$0xff]
    %v291 = vld [vmem:[#allocation5 + $0x7d8] sm:$0xff]
    %v292 = vld [vmem:[#allocation5 + $0x7e0] sm:$0xff]
    %v293 = vld [vmem:[#allocation5 + $0x7e8] sm:$0xff]
    %v294 = vld [vmem:[#allocation5 + $0x7f0] sm:$0xff]
    %v295 = vld [vmem:[#allocation5 + $0x7f8] sm:$0xff]
    %v296 = vld [vmem:[#allocation5 + $0x800] sm:$0xff]
    %v297 = vld [vmem:[#allocation5 + $0x808] sm:$0xff]
    %v298 = vld [vmem:[#allocation5 + $0x810] sm:$0xff]
    %v299 = vld [vmem:[#allocation5 + $0x818] sm:$0xff]
    %v300 = vld [vmem:[#allocation5 + $0x820] sm:$0xff]
    %v301 = vld [vmem:[#allocation5 + $0x828] sm:$0xff]
    %v302 = vld [vmem:[#allocation5 + $0x830] sm:$0xff]
    %v303 = vld [vmem:[#allocation5 + $0x838] sm:$0xff]
    %v304 = vld [vmem:[#allocation5 + $0x840] sm:$0xff]
    %v305 = vld [vmem:[#allocation5 + $0x848] sm:$0xff]
    %v306 = vld [vmem:[#allocation5 + $0x850] sm:$0xff]
    %v307 = vld [vmem:[#allocation5 + $0x858] sm:$0xff]
    %v308 = vld [vmem:[#allocation5 + $0x860] sm:$0xff]
    %v309 = vld [vmem:[#allocation5 + $0x868] sm:$0xff]
    %v310 = vld [vmem:[#allocation5 + $0x870] sm:$0xff]
    %v311 = vld [vmem:[#allocation5 + $0x878] sm:$0xff]
    %v312 = vld [vmem:[#allocation5 + $0x880] sm:$0xff]
    %v313 = vld [vmem:[#allocation5 + $0x888] sm:$0xff]
    %v314 = vld [vmem:[#allocation5 + $0x890] sm:$0xff]
    %v315 = vld [vmem:[#allocation5 + $0x898] sm:$0xff]
    %v316 = vld [vmem:[#allocation5 + $0x8a0] sm:$0xff]
    %v317 = vld [vmem:[#allocation5 + $0x8a8] sm:$0xff]
    %v318 = vld [vmem:[#allocation5 + $0x8b0] sm:$0xff]
    %v319 = vld [vmem:[#allocation5 + $0x8b8] sm:$0xff]
    %v320 = vld [vmem:[#allocation5 + $0x8c0] sm:$0xff]
    %v321 = vld [vmem:[#allocation5 + $0x8c8] sm:$0xff]
    %v322 = vld [vmem:[#allocation5 + $0x8d0] sm:$0xff]
    %v323 = vld [vmem:[#allocation5 + $0x8d8] sm:$0xff]
    %v324 = vld [vmem:[#allocation5 + $0x8e0] sm:$0xff]
    %v325 = vld [vmem:[#allocation5 + $0x8e8] sm:$0xff]
    %v326 = vld [vmem:[#allocation5 + $0x8f0] sm:$0xff]
    %v327 = vld [vmem:[#allocation5 + $0x8f8] sm:$0xff]
    %v328 = vld [vmem:[#allocation5 + $0x900] sm:$0xff]
    %v329 = vld [vmem:[#allocation5 + $0x908] sm:$0xff]
    %v330 = vld [vmem:[#allocation5 + $0x910] sm:$0xff]
    %v331 = vld [vmem:[#allocation5 + $0x918] sm:$0xff]
    %v332 = vld [vmem:[#allocation5 + $0x920] sm:$0xff]
    %v333 = vld [vmem:[#allocation5 + $0x928] sm:$0xff]
    %v334 = vld [vmem:[#allocation5 + $0x930] sm:$0xff]
    %v335 = vld [vmem:[#allocation5 + $0x938] sm:$0xff]
    %v336 = vld [vmem:[#allocation5 + $0x940] sm:$0xff]
    %v337 = vld [vmem:[#allocation5 + $0x948] sm:$0xff]
    %v338 = vld [vmem:[#allocation5 + $0x950] sm:$0xff]
    %v339 = vld [vmem:[#allocation5 + $0x958] sm:$0xff]
    %v340 = vld [vmem:[#allocation5 + $0x960] sm:$0xff]
    %v341 = vld [vmem:[#allocation5 + $0x968] sm:$0xff]
    %v342 = vld [vmem:[#allocation5 + $0x970] sm:$0xff]
    %v343 = vld [vmem:[#allocation5 + $0x978] sm:$0xff]
    %v344 = vld [vmem:[#allocation5 + $0x980] sm:$0xff]
    %v345 = vld [vmem:[#allocation5 + $0x988] sm:$0xff]
    %v346 = vld [vmem:[#allocation5 + $0x990] sm:$0xff]
    %v347 = vld [vmem:[#allocation5 + $0x998] sm:$0xff]
    %v348 = vld [vmem:[#allocation5 + $0x9a0] sm:$0xff]
    %v349 = vld [vmem:[#allocation5 + $0x9a8] sm:$0xff]
    %v350 = vld [vmem:[#allocation5 + $0x9b0] sm:$0xff]
    %v351 = vld [vmem:[#allocation5 + $0x9b8] sm:$0xff]
    %v352 = vld [vmem:[#allocation5 + $0x9c0] sm:$0xff]
    %v353 = vld [vmem:[#allocation5 + $0x9c8] sm:$0xff]
    %v354 = vld [vmem:[#allocation5 + $0x9d0] sm:$0xff]
    %v355 = vld [vmem:[#allocation5 + $0x9d8] sm:$0xff]
    %v356 = vld [vmem:[#allocation5 + $0x9e0] sm:$0xff]
    %v357 = vld [vmem:[#allocation5 + $0x9e8] sm:$0xff]
    %v358 = vld [vmem:[#allocation5 + $0x9f0] sm:$0xff]
    %v359 = vld [vmem:[#allocation5 + $0x9f8] sm:$0xff]
    %v360 = vld [vmem:[#allocation5 + $0xa00] sm:$0xff]
    %v361 = vld [vmem:[#allocation5 + $0xa08] sm:$0xff]
    %v362 = vld [vmem:[#allocation5 + $0xa10] sm:$0xff]
    %v363 = vld [vmem:[#allocation5 + $0xa18] sm:$0xff]
    %v364 = vld [vmem:[#allocation5 + $0xa20] sm:$0xff]
    %v365 = vld [vmem:[#allocation5 + $0xa28] sm:$0xff]
    %v366 = vld [vmem:[#allocation5 + $0xa30] sm:$0xff]
    %v367 = vld [vmem:[#allocation5 + $0xa38] sm:$0xff]
    %v368 = vld [vmem:[#allocation5 + $0xa40] sm:$0xff]
    %v369 = vld [vmem:[#allocation5 + $0xa48] sm:$0xff]
    %v370 = vld [vmem:[#allocation5 + $0xa50] sm:$0xff]
    %v371 = vld [vmem:[#allocation5 + $0xa58] sm:$0xff]
    %v372 = vld [vmem:[#allocation5 + $0xa60] sm:$0xff]
    %v373 = vld [vmem:[#allocation5 + $0xa68] sm:$0xff]
    %v374 = vld [vmem:[#allocation5 + $0xa70] sm:$0xff]
    %v375 = vld [vmem:[#allocation5 + $0xa78] sm:$0xff]
    %v376 = vld [vmem:[#allocation5 + $0xa80] sm:$0xff]
    %v377 = vld [vmem:[#allocation5 + $0xa88] sm:$0xff]
    %v378 = vld [vmem:[#allocation5 + $0xa90] sm:$0xff]
    %v379 = vld [vmem:[#allocation5 + $0xa98] sm:$0xff]
    %v380 = vld [vmem:[#allocation5 + $0xaa0] sm:$0xff]
    %v381 = vld [vmem:[#allocation5 + $0xaa8] sm:$0xff]
    %v382 = vld [vmem:[#allocation5 + $0xab0] sm:$0xff]
    %v383 = vld [vmem:[#allocation5 + $0xab8] sm:$0xff]
    %v384 = vld [vmem:[#allocation5 + $0xac0] sm:$0xff]
    %v385 = vld [vmem:[#allocation5 + $0xac8] sm:$0xff]
    %v386 = vld [vmem:[#allocation5 + $0xad0] sm:$0xff]
    %v387 = vld [vmem:[#allocation5 + $0xad8] sm:$0xff]
    %v388 = vld [vmem:[#allocation5 + $0xae0] sm:$0xff]
    %v389 = vld [vmem:[#allocation5 + $0xae8] sm:$0xff]
    %v390 = vld [vmem:[#allocation5 + $0xaf0] sm:$0xff]
    %v391 = vld [vmem:[#allocation5 + $0xaf8] sm:$0xff]
    %v392 = vld [vmem:[#allocation5 + $0xb00] sm:$0xff]
    %v393 = vld [vmem:[#allocation5 + $0xb08] sm:$0xff]
    %v394 = vld [vmem:[#allocation5 + $0xb10] sm:$0xff]
    %v395 = vld [vmem:[#allocation5 + $0xb18] sm:$0xff]
    %v396 = vld [vmem:[#allocation5 + $0xb20] sm:$0xff]
    %v397 = vld [vmem:[#allocation5 + $0xb28] sm:$0xff]
    %v398 = vld [vmem:[#allocation5 + $0xb30] sm:$0xff]
    %v399 = vld [vmem:[#allocation5 + $0xb38] sm:$0xff]
    %v400 = vld [vmem:[#allocation5 + $0xb40] sm:$0xff]
    %v401 = vld [vmem:[#allocation5 + $0xb48] sm:$0xff]
    %v402 = vld [vmem:[#allocation5 + $0xb50] sm:$0xff]
    %v403 = vld [vmem:[#allocation5 + $0xb58] sm:$0xff]
    %v404 = vld [vmem:[#allocation5 + $0xb60] sm:$0xff]
    %v405 = vld [vmem:[#allocation5 + $0xb68] sm:$0xff]
    %v406 = vld [vmem:[#allocation5 + $0xb70] sm:$0xff]
    %v407 = vld [vmem:[#allocation5 + $0xb78] sm:$0xff]
    %v408 = vld [vmem:[#allocation5 + $0xb80] sm:$0xff]
    %v409 = vld [vmem:[#allocation5 + $0xb88] sm:$0xff]
    %v410 = vld [vmem:[#allocation5 + $0xb90] sm:$0xff]
    %v411 = vld [vmem:[#allocation5 + $0xb98] sm:$0xff]
    %v412 = vld [vmem:[#allocation5 + $0xba0] sm:$0xff]
    %v413 = vld [vmem:[#allocation5 + $0xba8] sm:$0xff]
    %v414 = vld [vmem:[#allocation5 + $0xbb0] sm:$0xff]
    %v415 = vld [vmem:[#allocation5 + $0xbb8] sm:$0xff]
    %v416 = vld [vmem:[#allocation5 + $0xbc0] sm:$0xff]
    %v417 = vld [vmem:[#allocation5 + $0xbc8] sm:$0xff]
    %v418 = vld [vmem:[#allocation5 + $0xbd0] sm:$0xff]
    %v419 = vld [vmem:[#allocation5 + $0xbd8] sm:$0xff]
    %v420 = vld [vmem:[#allocation5 + $0xbe0] sm:$0xff]
    %v421 = vld [vmem:[#allocation5 + $0xbe8] sm:$0xff]
    %v422 = vld [vmem:[#allocation5 + $0xbf0] sm:$0xff]
    %v423 = vld [vmem:[#allocation5 + $0xbf8] sm:$0xff]
    %v424 = vld [vmem:[#allocation5 + $0xc00] sm:$0xff]
    %v425 = vld [vmem:[#allocation5 + $0xc08] sm:$0xff]
    %v426 = vld [vmem:[#allocation5 + $0xc10] sm:$0xff]
    %v427 = vld [vmem:[#allocation5 + $0xc18] sm:$0xff]
    %v428 = vld [vmem:[#allocation5 + $0xc20] sm:$0xff]
    %v429 = vld [vmem:[#allocation5 + $0xc28] sm:$0xff]
    %v430 = vld [vmem:[#allocation5 + $0xc30] sm:$0xff]
    %v431 = vld [vmem:[#allocation5 + $0xc38] sm:$0xff]
    %v432 = vld [vmem:[#allocation5 + $0xc40] sm:$0xff]
    %v433 = vld [vmem:[#allocation5 + $0xc48] sm:$0xff]
    %v434 = vld [vmem:[#allocation5 + $0xc50] sm:$0xff]
    %v435 = vld [vmem:[#allocation5 + $0xc58] sm:$0xff]
    %v436 = vld [vmem:[#allocation5 + $0xc60] sm:$0xff]
    %v437 = vld [vmem:[#allocation5 + $0xc68] sm:$0xff]
    %v438 = vld [vmem:[#allocation5 + $0xc70] sm:$0xff]
    %v439 = vld [vmem:[#allocation5 + $0xc78] sm:$0xff]
    %v440 = vld [vmem:[#allocation5 + $0xc80] sm:$0xff]
    %v441 = vld [vmem:[#allocation5 + $0xc88] sm:$0xff]
    %v442 = vld [vmem:[#allocation5 + $0xc90] sm:$0xff]
    %v443 = vld [vmem:[#allocation5 + $0xc98] sm:$0xff]
    %v444 = vld [vmem:[#allocation5 + $0xca0] sm:$0xff]
    %v445 = vld [vmem:[#allocation5 + $0xca8] sm:$0xff]
    %v446 = vld [vmem:[#allocation5 + $0xcb0] sm:$0xff]
    %v447 = vld [vmem:[#allocation5 + $0xcb8] sm:$0xff]
    %v448 = vld [vmem:[#allocation5 + $0xcc0] sm:$0xff]
    %v449 = vld [vmem:[#allocation5 + $0xcc8] sm:$0xff]
    %v450 = vld [vmem:[#allocation5 + $0xcd0] sm:$0xff]
    %v451 = vld [vmem:[#allocation5 + $0xcd8] sm:$0xff]
    %v452 = vld [vmem:[#allocation5 + $0xce0] sm:$0xff]
    %v453 = vld [vmem:[#allocation5 + $0xce8] sm:$0xff]
    %v454 = vld [vmem:[#allocation5 + $0xcf0] sm:$0xff]
    %v455 = vld [vmem:[#allocation5 + $0xcf8] sm:$0xff]
    %v456 = vld [vmem:[#allocation5 + $0xd00] sm:$0xff]
    %v457 = vld [vmem:[#allocation5 + $0xd08] sm:$0xff]
    %v458 = vld [vmem:[#allocation5 + $0xd10] sm:$0xff]
    %v459 = vld [vmem:[#allocation5 + $0xd18] sm:$0xff]
    %v460 = vld [vmem:[#allocation5 + $0xd20] sm:$0xff]
    %v461 = vld [vmem:[#allocation5 + $0xd28] sm:$0xff]
    %v462 = vld [vmem:[#allocation5 + $0xd30] sm:$0xff]
    %v463 = vld [vmem:[#allocation5 + $0xd38] sm:$0xff]
    %v464 = vld [vmem:[#allocation5 + $0xd40] sm:$0xff]
    %v465 = vld [vmem:[#allocation5 + $0xd48] sm:$0xff]
    %v466 = vld [vmem:[#allocation5 + $0xd50] sm:$0xff]
    %v467 = vld [vmem:[#allocation5 + $0xd58] sm:$0xff]
    %v468 = vld [vmem:[#allocation5 + $0xd60] sm:$0xff]
    %v469 = vld [vmem:[#allocation5 + $0xd68] sm:$0xff]
    %v470 = vld [vmem:[#allocation5 + $0xd70] sm:$0xff]
    %v471 = vld [vmem:[#allocation5 + $0xd78] sm:$0xff]
    %v472 = vld [vmem:[#allocation5 + $0xd80] sm:$0xff]
    %v473 = vld [vmem:[#allocation5 + $0xd88] sm:$0xff]
    %v474 = vld [vmem:[#allocation5 + $0xd90] sm:$0xff]
    %v475 = vld [vmem:[#allocation5 + $0xd98] sm:$0xff]
    %v476 = vld [vmem:[#allocation5 + $0xda0] sm:$0xff]
    %v477 = vld [vmem:[#allocation5 + $0xda8] sm:$0xff]
    %v478 = vld [vmem:[#allocation5 + $0xdb0] sm:$0xff]
    %v479 = vld [vmem:[#allocation5 + $0xdb8] sm:$0xff]
    %v480 = vld [vmem:[#allocation5 + $0xdc0] sm:$0xff]
    %v481 = vld [vmem:[#allocation5 + $0xdc8] sm:$0xff]
    %v482 = vld [vmem:[#allocation5 + $0xdd0] sm:$0xff]
    %v483 = vld [vmem:[#allocation5 + $0xdd8] sm:$0xff]
    %v484 = vld [vmem:[#allocation5 + $0xde0] sm:$0xff]
    %v485 = vld [vmem:[#allocation5 + $0xde8] sm:$0xff]
    %v486 = vld [vmem:[#allocation5 + $0xdf0] sm:$0xff]
    %v487 = vld [vmem:[#allocation5 + $0xdf8] sm:$0xff]
    %v488 = vld [vmem:[#allocation5 + $0xe00] sm:$0xff]
    %v489 = vld [vmem:[#allocation5 + $0xe08] sm:$0xff]
    %v490 = vld [vmem:[#allocation5 + $0xe10] sm:$0xff]
    %v491 = vld [vmem:[#allocation5 + $0xe18] sm:$0xff]
    %v492 = vld [vmem:[#allocation5 + $0xe20] sm:$0xff]
    %v493 = vld [vmem:[#allocation5 + $0xe28] sm:$0xff]
    %v494 = vld [vmem:[#allocation5 + $0xe30] sm:$0xff]
    %v495 = vld [vmem:[#allocation5 + $0xe38] sm:$0xff]
    %v496 = vld [vmem:[#allocation5 + $0xe40] sm:$0xff]
    %v497 = vld [vmem:[#allocation5 + $0xe48] sm:$0xff]
    %v498 = vld [vmem:[#allocation5 + $0xe50] sm:$0xff]
    %v499 = vld [vmem:[#allocation5 + $0xe58] sm:$0xff]
    %v500 = vld [vmem:[#allocation5 + $0xe60] sm:$0xff]
    %v501 = vld [vmem:[#allocation5 + $0xe68] sm:$0xff]
    %v502 = vld [vmem:[#allocation5 + $0xe70] sm:$0xff]
    %v503 = vld [vmem:[#allocation5 + $0xe78] sm:$0xff]
    %v504 = vld [vmem:[#allocation5 + $0xe80] sm:$0xff]
    %v505 = vld [vmem:[#allocation5 + $0xe88] sm:$0xff]
    %v506 = vld [vmem:[#allocation5 + $0xe90] sm:$0xff]
    %v507 = vld [vmem:[#allocation5 + $0xe98] sm:$0xff]
    %v508 = vld [vmem:[#allocation5 + $0xea0] sm:$0xff]
    %v509 = vld [vmem:[#allocation5 + $0xea8] sm:$0xff]
    %v510 = vld [vmem:[#allocation5 + $0xeb0] sm:$0xff]
    %v511 = vld [vmem:[#allocation5 + $0xeb8] sm:$0xff]
    %v512 = vld [vmem:[#allocation5 + $0xec0] sm:$0xff]
    %v513 = vld [vmem:[#allocation5 + $0xec8] sm:$0xff]
    %v514 = vld [vmem:[#allocation5 + $0xed0] sm:$0xff]
    %v515 = vld [vmem:[#allocation5 + $0xed8] sm:$0xff]
    %v516 = vld [vmem:[#allocation5 + $0xee0] sm:$0xff]
    %v517 = vld [vmem:[#allocation5 + $0xee8] sm:$0xff]
    %v518 = vld [vmem:[#allocation5 + $0xef0] sm:$0xff]
    %v519 = vld [vmem:[#allocation5 + $0xef8] sm:$0xff]
    %v520 = vld [vmem:[#allocation5 + $0xf00] sm:$0xff]
    %v521 = vld [vmem:[#allocation5 + $0xf08] sm:$0xff]
    %v522 = vld [vmem:[#allocation5 + $0xf10] sm:$0xff]
    %v523 = vld [vmem:[#allocation5 + $0xf18] sm:$0xff]
    %v524 = vld [vmem:[#allocation5 + $0xf20] sm:$0xff]
    %v525 = vld [vmem:[#allocation5 + $0xf28] sm:$0xff]
    %v526 = vld [vmem:[#allocation5 + $0xf30] sm:$0xff]
    %v527 = vld [vmem:[#allocation5 + $0xf38] sm:$0xff]
    %v528 = vld [vmem:[#allocation5 + $0xf40] sm:$0xff]
    %v529 = vld [vmem:[#allocation5 + $0xf48] sm:$0xff]
    %v530 = vld [vmem:[#allocation5 + $0xf50] sm:$0xff]
    %v531 = vld [vmem:[#allocation5 + $0xf58] sm:$0xff]
    %v532 = vld [vmem:[#allocation5 + $0xf60] sm:$0xff]
    %v533 = vld [vmem:[#allocation5 + $0xf68] sm:$0xff]
    %v534 = vld [vmem:[#allocation5 + $0xf70] sm:$0xff]
    %v535 = vld [vmem:[#allocation5 + $0xf78] sm:$0xff]
    %v536 = vld [vmem:[#allocation5 + $0xf80] sm:$0xff]
    %v537 = vld [vmem:[#allocation5 + $0xf88] sm:$0xff]
    %v538 = vld [vmem:[#allocation5 + $0xf90] sm:$0xff]
    %v539 = vld [vmem:[#allocation5 + $0xf98] sm:$0xff]
    %v540 = vld [vmem:[#allocation5 + $0xfa0] sm:$0xff]
    %v541 = vld [vmem:[#allocation5 + $0xfa8] sm:$0xff]
    %v542 = vld [vmem:[#allocation5 + $0xfb0] sm:$0xff]
    %v543 = vld [vmem:[#allocation5 + $0xfb8] sm:$0xff]
    %v544 = vld [vmem:[#allocation5 + $0xfc0] sm:$0xff]
    %v545 = vld [vmem:[#allocation5 + $0xfc8] sm:$0xff]
    %v546 = vld [vmem:[#allocation5 + $0xfd0] sm:$0xff]
    %v547 = vld [vmem:[#allocation5 + $0xfd8] sm:$0xff]
    %v548 = vld [vmem:[#allocation5 + $0xfe0] sm:$0xff]
    %v549 = vld [vmem:[#allocation5 + $0xfe8] sm:$0xff]
    %v550 = vld [vmem:[#allocation5 + $0xff0] sm:$0xff]
    %v551 = vld [vmem:[#allocation5 + $0xff8] sm:$0xff]
    %v552 = vld [vmem:[#allocation5 + $0x1000] sm:$0xff]
    %v553 = vld [vmem:[#allocation5 + $0x1008] sm:$0xff]
    %v554 = vld [vmem:[#allocation5 + $0x1010] sm:$0xff]
    %v555 = vld [vmem:[#allocation5 + $0x1018] sm:$0xff]
    %v556 = vld [vmem:[#allocation5 + $0x1020] sm:$0xff]
    %v557 = vld [vmem:[#allocation5 + $0x1028] sm:$0xff]
    %v558 = vld [vmem:[#allocation5 + $0x1030] sm:$0xff]
    %v559 = vld [vmem:[#allocation5 + $0x1038] sm:$0xff]
    %v560 = vld [vmem:[#allocation5 + $0x1040] sm:$0xff]
    %v561 = vld [vmem:[#allocation5 + $0x1048] sm:$0xff]
    %v562 = vld [vmem:[#allocation5 + $0x1050] sm:$0xff]
    %v563 = vld [vmem:[#allocation5 + $0x1058] sm:$0xff]
    %v564 = vld [vmem:[#allocation5 + $0x1060] sm:$0xff]
    %v565 = vld [vmem:[#allocation5 + $0x1068] sm:$0xff]
    %v566 = vld [vmem:[#allocation5 + $0x1070] sm:$0xff]
    %v567 = vld [vmem:[#allocation5 + $0x1078] sm:$0xff]
    %v568 = vld [vmem:[#allocation5 + $0x1080] sm:$0xff]
    %v569 = vld [vmem:[#allocation5 + $0x1088] sm:$0xff]
    %v570 = vld [vmem:[#allocation5 + $0x1090] sm:$0xff]
    %v571 = vld [vmem:[#allocation5 + $0x1098] sm:$0xff]
    %v572 = vld [vmem:[#allocation5 + $0x10a0] sm:$0xff]
    %v573 = vld [vmem:[#allocation5 + $0x10a8] sm:$0xff]
    %v574 = vld [vmem:[#allocation5 + $0x10b0] sm:$0xff]
    %v575 = vld [vmem:[#allocation5 + $0x10b8] sm:$0xff]
    %v576 = vld [vmem:[#allocation5 + $0x10c0] sm:$0xff]
    %v577 = vld [vmem:[#allocation5 + $0x10c8] sm:$0xff]
    %v578 = vld [vmem:[#allocation5 + $0x10d0] sm:$0xff]
    %v579 = vld [vmem:[#allocation5 + $0x10d8] sm:$0xff]
    %v580 = vld [vmem:[#allocation5 + $0x10e0] sm:$0xff]
    %v581 = vld [vmem:[#allocation5 + $0x10e8] sm:$0xff]
    %v582 = vld [vmem:[#allocation5 + $0x10f0] sm:$0xff]
    %v583 = vld [vmem:[#allocation5 + $0x10f8] sm:$0xff]
    %v584 = vld [vmem:[#allocation5 + $0x1100] sm:$0xff]
    %v585 = vld [vmem:[#allocation5 + $0x1108] sm:$0xff]
    %v586 = vld [vmem:[#allocation5 + $0x1110] sm:$0xff]
    %v587 = vld [vmem:[#allocation5 + $0x1118] sm:$0xff]
    %v588 = vld [vmem:[#allocation5 + $0x1120] sm:$0xff]
    %v589 = vld [vmem:[#allocation5 + $0x1128] sm:$0xff]
    %v590 = vld [vmem:[#allocation5 + $0x1130] sm:$0xff]
    %v591 = vld [vmem:[#allocation5 + $0x1138] sm:$0xff]
    %v592 = vld [vmem:[#allocation5 + $0x1140] sm:$0xff]
    %v593 = vld [vmem:[#allocation5 + $0x1148] sm:$0xff]
    %v594 = vld [vmem:[#allocation5 + $0x1150] sm:$0xff]
    %v595 = vld [vmem:[#allocation5 + $0x1158] sm:$0xff]
    %v596 = vld [vmem:[#allocation5 + $0x1160] sm:$0xff]
    %v597 = vld [vmem:[#allocation5 + $0x1168] sm:$0xff]
    %v598 = vld [vmem:[#allocation5 + $0x1170] sm:$0xff]
    %v599 = vld [vmem:[#allocation5 + $0x1178] sm:$0xff]
    %v600 = vld [vmem:[#allocation5 + $0x1180] sm:$0xff]
    %v601 = vld [vmem:[#allocation5 + $0x1188] sm:$0xff]
    %v602 = vld [vmem:[#allocation5 + $0x1190] sm:$0xff]
    %v603 = vld [vmem:[#allocation5 + $0x1198] sm:$0xff]
    %v604 = vld [vmem:[#allocation5 + $0x11a0] sm:$0xff]
    %v605 = vld [vmem:[#allocation5 + $0x11a8] sm:$0xff]
    %v606 = vld [vmem:[#allocation5 + $0x11b0] sm:$0xff]
    %v607 = vld [vmem:[#allocation5 + $0x11b8] sm:$0xff]
    %v608 = vld [vmem:[#allocation5 + $0x11c0] sm:$0xff]
    %v609 = vld [vmem:[#allocation5 + $0x11c8] sm:$0xff]
    %v610 = vld [vmem:[#allocation5 + $0x11d0] sm:$0xff]
    %v611 = vld [vmem:[#allocation5 + $0x11d8] sm:$0xff]
    %v612 = vld [vmem:[#allocation5 + $0x11e0] sm:$0xff]
    %v613 = vld [vmem:[#allocation5 + $0x11e8] sm:$0xff]
    %v614 = vld [vmem:[#allocation5 + $0x11f0] sm:$0xff]
    %v615 = vld [vmem:[#allocation5 + $0x11f8] sm:$0xff]
    %v616 = vld [vmem:[#allocation5 + $0x1200] sm:$0xff]
    %v617 = vld [vmem:[#allocation5 + $0x1208] sm:$0xff]
    %v618 = vld [vmem:[#allocation5 + $0x1210] sm:$0xff]
    %v619 = vld [vmem:[#allocation5 + $0x1218] sm:$0xff]
    %v620 = vld [vmem:[#allocation5 + $0x1220] sm:$0xff]
    %v621 = vld [vmem:[#allocation5 + $0x1228] sm:$0xff]
    %v622 = vld [vmem:[#allocation5 + $0x1230] sm:$0xff]
    %v623 = vld [vmem:[#allocation5 + $0x1238] sm:$0xff]
    %v624 = vld [vmem:[#allocation5 + $0x1240] sm:$0xff]
    %v625 = vld [vmem:[#allocation5 + $0x1248] sm:$0xff]
    %v626 = vld [vmem:[#allocation5 + $0x1250] sm:$0xff]
    %v627 = vld [vmem:[#allocation5 + $0x1258] sm:$0xff]
    %v628 = vld [vmem:[#allocation5 + $0x1260] sm:$0xff]
    %v629 = vld [vmem:[#allocation5 + $0x1268] sm:$0xff]
    %v630 = vld [vmem:[#allocation5 + $0x1270] sm:$0xff]
    %v631 = vld [vmem:[#allocation5 + $0x1278] sm:$0xff]
    %v632 = vld [vmem:[#allocation5 + $0x1280] sm:$0xff]
    %v633 = vld [vmem:[#allocation5 + $0x1288] sm:$0xff]
    %v634 = vld [vmem:[#allocation5 + $0x1290] sm:$0xff]
    %v635 = vld [vmem:[#allocation5 + $0x1298] sm:$0xff]
    %v636 = vld [vmem:[#allocation5 + $0x12a0] sm:$0xff]
    %v637 = vld [vmem:[#allocation5 + $0x12a8] sm:$0xff]
    %v638 = vld [vmem:[#allocation5 + $0x12b0] sm:$0xff]
    %v639 = vld [vmem:[#allocation5 + $0x12b8] sm:$0xff]
    %v640 = vld [vmem:[#allocation5 + $0x12c0] sm:$0xff]
    %v641 = vld [vmem:[#allocation5 + $0x12c8] sm:$0xff]
    %v642 = vld [vmem:[#allocation5 + $0x12d0] sm:$0xff]
    %v643 = vld [vmem:[#allocation5 + $0x12d8] sm:$0xff]
    %v644 = vld [vmem:[#allocation5 + $0x12e0] sm:$0xff]
    %v645 = vld [vmem:[#allocation5 + $0x12e8] sm:$0xff]
    %v646 = vld [vmem:[#allocation5 + $0x12f0] sm:$0xff]
    %v647 = vld [vmem:[#allocation5 + $0x12f8] sm:$0xff]
    %v648 = vld [vmem:[#allocation5 + $0x1300] sm:$0xff]
    %v649 = vld [vmem:[#allocation5 + $0x1308] sm:$0xff]
    %v650 = vld [vmem:[#allocation5 + $0x1310] sm:$0xff]
    %v651 = vld [vmem:[#allocation5 + $0x1318] sm:$0xff]
    %v652 = vld [vmem:[#allocation5 + $0x1320] sm:$0xff]
    %v653 = vld [vmem:[#allocation5 + $0x1328] sm:$0xff]
    %v654 = vld [vmem:[#allocation5 + $0x1330] sm:$0xff]
    %v655 = vld [vmem:[#allocation5 + $0x1338] sm:$0xff]
    %v656 = vld [vmem:[#allocation5 + $0x1340] sm:$0xff]
    %v657 = vld [vmem:[#allocation5 + $0x1348] sm:$0xff]
    %v658 = vld [vmem:[#allocation5 + $0x1350] sm:$0xff]
    %v659 = vld [vmem:[#allocation5 + $0x1358] sm:$0xff]
    %v660 = vld [vmem:[#allocation5 + $0x1360] sm:$0xff]
    %v661 = vld [vmem:[#allocation5 + $0x1368] sm:$0xff]
    %v662 = vld [vmem:[#allocation5 + $0x1370] sm:$0xff]
    %v663 = vld [vmem:[#allocation5 + $0x1378] sm:$0xff]
    %v664 = vld [vmem:[#allocation5 + $0x1380] sm:$0xff]
    %v665 = vld [vmem:[#allocation5 + $0x1388] sm:$0xff]
    %v666 = vld [vmem:[#allocation5 + $0x1390] sm:$0xff]
    %v667 = vld [vmem:[#allocation5 + $0x1398] sm:$0xff]
    %v668 = vld [vmem:[#allocation5 + $0x13a0] sm:$0xff]
    %v669 = vld [vmem:[#allocation5 + $0x13a8] sm:$0xff]
    %v670 = vld [vmem:[#allocation5 + $0x13b0] sm:$0xff]
    %v671 = vld [vmem:[#allocation5 + $0x13b8] sm:$0xff]
    %v672 = vld [vmem:[#allocation5 + $0x13c0] sm:$0xff]
    %v673 = vld [vmem:[#allocation5 + $0x13c8] sm:$0xff]
    %v674 = vld [vmem:[#allocation5 + $0x13d0] sm:$0xff]
    %v675 = vld [vmem:[#allocation5 + $0x13d8] sm:$0xff]
    %v676 = vld [vmem:[#allocation5 + $0x13e0] sm:$0xff]
    %v677 = vld [vmem:[#allocation5 + $0x13e8] sm:$0xff]
    %v678 = vld [vmem:[#allocation5 + $0x13f0] sm:$0xff]
    %v679 = vld [vmem:[#allocation5 + $0x13f8] sm:$0xff]
    %v680 = vld [vmem:[#allocation5 + $0x1400] sm:$0xff]
    %v681 = vld [vmem:[#allocation5 + $0x1408] sm:$0xff]
    %v682 = vld [vmem:[#allocation5 + $0x1410] sm:$0xff]
    %v683 = vld [vmem:[#allocation5 + $0x1418] sm:$0xff]
    %v684 = vld [vmem:[#allocation5 + $0x1420] sm:$0xff]
    %v685 = vld [vmem:[#allocation5 + $0x1428] sm:$0xff]
    %v686 = vld [vmem:[#allocation5 + $0x1430] sm:$0xff]
    %v687 = vld [vmem:[#allocation5 + $0x1438] sm:$0xff]
    %v688 = vld [vmem:[#allocation5 + $0x1440] sm:$0xff]
    %v689 = vld [vmem:[#allocation5 + $0x1448] sm:$0xff]
    %v690 = vld [vmem:[#allocation5 + $0x1450] sm:$0xff]
    %v691 = vld [vmem:[#allocation5 + $0x1458] sm:$0xff]
    %v692 = vld [vmem:[#allocation5 + $0x1460] sm:$0xff]
    %v693 = vld [vmem:[#allocation5 + $0x1468] sm:$0xff]
    %v694 = vld [vmem:[#allocation5 + $0x1470] sm:$0xff]
    %v695 = vld [vmem:[#allocation5 + $0x1478] sm:$0xff]
    %v696 = vld [vmem:[#allocation5 + $0x1480] sm:$0xff]
    %v697 = vld [vmem:[#allocation5 + $0x1488] sm:$0xff]
    %v698 = vld [vmem:[#allocation5 + $0x1490] sm:$0xff]
    %v699 = vld [vmem:[#allocation5 + $0x1498] sm:$0xff]
    %v700 = vld [vmem:[#allocation5 + $0x14a0] sm:$0xff]
    %v701 = vld [vmem:[#allocation5 + $0x14a8] sm:$0xff]
    %v702 = vld [vmem:[#allocation5 + $0x14b0] sm:$0xff]
    %v703 = vld [vmem:[#allocation5 + $0x14b8] sm:$0xff]
    %v704 = vld [vmem:[#allocation5 + $0x14c0] sm:$0xff]
    %v705 = vld [vmem:[#allocation5 + $0x14c8] sm:$0xff]
    %v706 = vld [vmem:[#allocation5 + $0x14d0] sm:$0xff]
    %v707 = vld [vmem:[#allocation5 + $0x14d8] sm:$0xff]
    %v708 = vld [vmem:[#allocation5 + $0x14e0] sm:$0xff]
    %v709 = vld [vmem:[#allocation5 + $0x14e8] sm:$0xff]
    %v710 = vld [vmem:[#allocation5 + $0x14f0] sm:$0xff]
    %v711 = vld [vmem:[#allocation5 + $0x14f8] sm:$0xff]
    %v712 = vld [vmem:[#allocation5 + $0x1500] sm:$0xff]
    %v713 = vld [vmem:[#allocation5 + $0x1508] sm:$0xff]
    %v714 = vld [vmem:[#allocation5 + $0x1510] sm:$0xff]
    %v715 = vld [vmem:[#allocation5 + $0x1518] sm:$0xff]
    %v716 = vld [vmem:[#allocation5 + $0x1520] sm:$0xff]
    %v717 = vld [vmem:[#allocation5 + $0x1528] sm:$0xff]
    %v718 = vld [vmem:[#allocation5 + $0x1530] sm:$0xff]
    %v719 = vld [vmem:[#allocation5 + $0x1538] sm:$0xff]
    %v720 = vld [vmem:[#allocation5 + $0x1540] sm:$0xff]
    %v721 = vld [vmem:[#allocation5 + $0x1548] sm:$0xff]
    %v722 = vld [vmem:[#allocation5 + $0x1550] sm:$0xff]
    %v723 = vld [vmem:[#allocation5 + $0x1558] sm:$0xff]
    %v724 = vld [vmem:[#allocation5 + $0x1560] sm:$0xff]
    %v725 = vld [vmem:[#allocation5 + $0x1568] sm:$0xff]
    %v726 = vld [vmem:[#allocation5 + $0x1570] sm:$0xff]
    %v727 = vld [vmem:[#allocation5 + $0x1578] sm:$0xff]
    %v728 = vld [vmem:[#allocation5 + $0x1580] sm:$0xff]
    %v729 = vld [vmem:[#allocation5 + $0x1588] sm:$0xff]
    %v730 = vld [vmem:[#allocation5 + $0x1590] sm:$0xff]
    %v731 = vld [vmem:[#allocation5 + $0x1598] sm:$0xff]
    %v732 = vld [vmem:[#allocation5 + $0x15a0] sm:$0xff]
    %v733 = vld [vmem:[#allocation5 + $0x15a8] sm:$0xff]
    %v734 = vld [vmem:[#allocation5 + $0x15b0] sm:$0xff]
    %v735 = vld [vmem:[#allocation5 + $0x15b8] sm:$0xff]
    %v736 = vld [vmem:[#allocation5 + $0x15c0] sm:$0xff]
    %v737 = vld [vmem:[#allocation5 + $0x15c8] sm:$0xff]
    %v738 = vld [vmem:[#allocation5 + $0x15d0] sm:$0xff]
    %v739 = vld [vmem:[#allocation5 + $0x15d8] sm:$0xff]
    %v740 = vld [vmem:[#allocation5 + $0x15e0] sm:$0xff]
    %v741 = vld [vmem:[#allocation5 + $0x15e8] sm:$0xff]
    %v742 = vld [vmem:[#allocation5 + $0x15f0] sm:$0xff]
    %v743 = vld [vmem:[#allocation5 + $0x15f8] sm:$0xff]
    %v744 = vld [vmem:[#allocation5 + $0x1600] sm:$0xff]
    %v745 = vld [vmem:[#allocation5 + $0x1608] sm:$0xff]
    %v746 = vld [vmem:[#allocation5 + $0x1610] sm:$0xff]
    %v747 = vld [vmem:[#allocation5 + $0x1618] sm:$0xff]
    %v748 = vld [vmem:[#allocation5 + $0x1620] sm:$0xff]
    %v749 = vld [vmem:[#allocation5 + $0x1628] sm:$0xff]
    %v750 = vld [vmem:[#allocation5 + $0x1630] sm:$0xff]
    %v751 = vld [vmem:[#allocation5 + $0x1638] sm:$0xff]
    %v752 = vld [vmem:[#allocation5 + $0x1640] sm:$0xff]
    %v753 = vld [vmem:[#allocation5 + $0x1648] sm:$0xff]
    %v754 = vld [vmem:[#allocation5 + $0x1650] sm:$0xff]
    %v755 = vld [vmem:[#allocation5 + $0x1658] sm:$0xff]
    %v756 = vld [vmem:[#allocation5 + $0x1660] sm:$0xff]
    %v757 = vld [vmem:[#allocation5 + $0x1668] sm:$0xff]
    %v758 = vld [vmem:[#allocation5 + $0x1670] sm:$0xff]
    %v759 = vld [vmem:[#allocation5 + $0x1678] sm:$0xff]
    %v760 = vld [vmem:[#allocation5 + $0x1680] sm:$0xff]
    %v761 = vld [vmem:[#allocation5 + $0x1688] sm:$0xff]
    %v762 = vld [vmem:[#allocation5 + $0x1690] sm:$0xff]
    %v763 = vld [vmem:[#allocation5 + $0x1698] sm:$0xff]
    %v764 = vld [vmem:[#allocation5 + $0x16a0] sm:$0xff]
    %v765 = vld [vmem:[#allocation5 + $0x16a8] sm:$0xff]
    %v766 = vld [vmem:[#allocation5 + $0x16b0] sm:$0xff]
    %v767 = vld [vmem:[#allocation5 + $0x16b8] sm:$0xff]
    %v768 = vld [vmem:[#allocation5 + $0x16c0] sm:$0xff]
    %v769 = vld [vmem:[#allocation5 + $0x16c8] sm:$0xff]
    %v770 = vld [vmem:[#allocation5 + $0x16d0] sm:$0xff]
    %v771 = vld [vmem:[#allocation5 + $0x16d8] sm:$0xff]
    %v772 = vld [vmem:[#allocation5 + $0x16e0] sm:$0xff]
    %v773 = vld [vmem:[#allocation5 + $0x16e8] sm:$0xff]
    %v774 = vld [vmem:[#allocation5 + $0x16f0] sm:$0xff]
    %v775 = vld [vmem:[#allocation5 + $0x16f8] sm:$0xff]
    %v776 = vld [vmem:[#allocation5 + $0x1700] sm:$0xff]
    %v777 = vld [vmem:[#allocation5 + $0x1708] sm:$0xff]
    %v778 = vld [vmem:[#allocation5 + $0x1710] sm:$0xff]
    %v779 = vld [vmem:[#allocation5 + $0x1718] sm:$0xff]
    %v780 = vld [vmem:[#allocation5 + $0x1720] sm:$0xff]
    %v781 = vld [vmem:[#allocation5 + $0x1728] sm:$0xff]
    %v782 = vld [vmem:[#allocation5 + $0x1730] sm:$0xff]
    %v783 = vld [vmem:[#allocation5 + $0x1738] sm:$0xff]
    %v784 = vld [vmem:[#allocation5 + $0x1740] sm:$0xff]
    %v785 = vld [vmem:[#allocation5 + $0x1748] sm:$0xff]
    %v786 = vld [vmem:[#allocation5 + $0x1750] sm:$0xff]
    %v787 = vld [vmem:[#allocation5 + $0x1758] sm:$0xff]
    %v788 = vld [vmem:[#allocation5 + $0x1760] sm:$0xff]
    %v789 = vld [vmem:[#allocation5 + $0x1768] sm:$0xff]
    %v790 = vld [vmem:[#allocation5 + $0x1770] sm:$0xff]
    %v791 = vld [vmem:[#allocation5 + $0x1778] sm:$0xff]
    %v792 = vld [vmem:[#allocation5 + $0x1780] sm:$0xff]
    %v793 = vld [vmem:[#allocation5 + $0x1788] sm:$0xff]
    %v794 = vld [vmem:[#allocation5 + $0x1790] sm:$0xff]
    %v795 = vld [vmem:[#allocation5 + $0x1798] sm:$0xff]
    %v796 = vld [vmem:[#allocation5 + $0x17a0] sm:$0xff]
    %v797 = vld [vmem:[#allocation5 + $0x17a8] sm:$0xff]
    %v798 = vld [vmem:[#allocation5 + $0x17b0] sm:$0xff]
    %v799 = vld [vmem:[#allocation5 + $0x17b8] sm:$0xff]
    %v800 = vld [vmem:[#allocation5 + $0x17c0] sm:$0xff]
    %v801 = vld [vmem:[#allocation5 + $0x17c8] sm:$0xff]
    %v802 = vld [vmem:[#allocation5 + $0x17d0] sm:$0xff]
    %v803 = vld [vmem:[#allocation5 + $0x17d8] sm:$0xff]
    %v804 = vld [vmem:[#allocation5 + $0x17e0] sm:$0xff]
    %v805 = vld [vmem:[#allocation5 + $0x17e8] sm:$0xff]
    %v806 = vld [vmem:[#allocation5 + $0x17f0] sm:$0xff]
    %v807 = vld [vmem:[#allocation5 + $0x17f8] sm:$0xff]
    %v808 = vld [vmem:[#allocation5 + $0x1800] sm:$0xff]
    %v809 = vld [vmem:[#allocation5 + $0x1808] sm:$0xff]
    %v810 = vld [vmem:[#allocation5 + $0x1810] sm:$0xff]
    %v811 = vld [vmem:[#allocation5 + $0x1818] sm:$0xff]
    %v812 = vld [vmem:[#allocation5 + $0x1820] sm:$0xff]
    %v813 = vld [vmem:[#allocation5 + $0x1828] sm:$0xff]
    %v814 = vld [vmem:[#allocation5 + $0x1830] sm:$0xff]
    %v815 = vld [vmem:[#allocation5 + $0x1838] sm:$0xff]
    %v816 = vld [vmem:[#allocation5 + $0x1840] sm:$0xff]
    %v817 = vld [vmem:[#allocation5 + $0x1848] sm:$0xff]
    %v818 = vld [vmem:[#allocation5 + $0x1850] sm:$0xff]
    %v819 = vld [vmem:[#allocation5 + $0x1858] sm:$0xff]
    %v820 = vld [vmem:[#allocation5 + $0x1860] sm:$0xff]
    %v821 = vld [vmem:[#allocation5 + $0x1868] sm:$0xff]
    %v822 = vld [vmem:[#allocation5 + $0x1870] sm:$0xff]
    %v823 = vld [vmem:[#allocation5 + $0x1878] sm:$0xff]
    %v824 = vld [vmem:[#allocation5 + $0x1880] sm:$0xff]
    %v825 = vld [vmem:[#allocation5 + $0x1888] sm:$0xff]
    %v826 = vld [vmem:[#allocation5 + $0x1890] sm:$0xff]
    %v827 = vld [vmem:[#allocation5 + $0x1898] sm:$0xff]
    %v828 = vld [vmem:[#allocation5 + $0x18a0] sm:$0xff]
    %v829 = vld [vmem:[#allocation5 + $0x18a8] sm:$0xff]
    %v830 = vld [vmem:[#allocation5 + $0x18b0] sm:$0xff]
    %v831 = vld [vmem:[#allocation5 + $0x18b8] sm:$0xff]
    %v832 = vld [vmem:[#allocation5 + $0x18c0] sm:$0xff]
    %v833 = vld [vmem:[#allocation5 + $0x18c8] sm:$0xff]
    %v834 = vld [vmem:[#allocation5 + $0x18d0] sm:$0xff]
    %v835 = vld [vmem:[#allocation5 + $0x18d8] sm:$0xff]
    %v836 = vld [vmem:[#allocation5 + $0x18e0] sm:$0xff]
    %v837 = vld [vmem:[#allocation5 + $0x18e8] sm:$0xff]
    %v838 = vld [vmem:[#allocation5 + $0x18f0] sm:$0xff]
    %v839 = vld [vmem:[#allocation5 + $0x18f8] sm:$0xff]
    %v842 = vlaneseq
    %v843 = vshrl.u32 %v842, 7
    %v844 = vsub.s32 0, %v843
    %v845 = vrot.slane %v38, %v844
    %v846 = vlaneseq
    %v847 = vshrl.u32 %v846, 7
    %v848 = vsub.s32 1, %v847
    %v849 = vrot.slane %v38, %v848
    %v850 = vlaneseq
    %v851 = vshrl.u32 %v850, 7
    %v852 = vsub.s32 2, %v851
    %v853 = vrot.slane %v38, %v852
    %v854 = vlaneseq
    %v855 = vshrl.u32 %v854, 7
    %v856 = vsub.s32 3, %v855
    %v857 = vrot.slane %v38, %v856
    %v858 = vlaneseq
    %v859 = vshrl.u32 %v858, 7
    %v860 = vsub.s32 4, %v859
    %v861 = vrot.slane %v38, %v860
    %v862 = vlaneseq
    %v863 = vshrl.u32 %v862, 7
    %v864 = vsub.s32 5, %v863
    %v865 = vrot.slane %v38, %v864
    %v866 = vlaneseq
    %v867 = vshrl.u32 %v866, 7
    %v868 = vsub.s32 6, %v867
    %v869 = vrot.slane %v38, %v868
    %v870 = vlaneseq
    %v871 = vshrl.u32 %v870, 7
    %v872 = vsub.s32 7, %v871
    %v873 = vrot.slane %v38, %v872
    %v874 = vlaneseq
    %v875 = vshrl.u32 %v874, 7
    %v876 = vsub.s32 0, %v875
    %v877 = vrot.slane %v39, %v876
    %v878 = vlaneseq
    %v879 = vshrl.u32 %v878, 7
    %v880 = vsub.s32 1, %v879
    %v881 = vrot.slane %v39, %v880
    %892 = vmatprep.subr.mxu0 %v116
    %893 = vmatpush1.msra.mxu0 %v115
    %894 = vmatprep.subr.mxu0 %v111
    %895 = vmatpush1.msra.mxu0 %v110
    %896 = vmatprep.subr.mxu0 %v106
    %897 = vmatpush1.msra.mxu0 %v105
    %898 = vmatprep.subr.mxu0 %v101
    %899 = vmatpush1.msra.mxu0 %v100
    %900 = vmatprep.subr.mxu0 %v96
    %901 = vmatpush1.msra.mxu0 %v95
    %902 = vmatprep.subr.mxu0 %v91
    %903 = vmatpush1.msra.mxu0 %v90
    %904 = vmatprep.subr.mxu0 %v86
    %905 = vmatpush1.msra.mxu0 %v85
    %906 = vmatprep.subr.mxu0 %v81
    %907 = vmatpush1.msra.mxu0 %v80
    %908 = vmatprep.subr.mxu0 %v76
    %909 = vmatpush1.msra.mxu0 %v75
    %910 = vmatprep.subr.mxu0 %v71
    %911 = vmatpush1.msra.mxu0 %v70
    %912 = vmatprep.subr.mxu0 %v66
    %913 = vmatpush1.msra.mxu0 %v65
    %914 = vmatprep.subr.mxu0 %v61
    %915 = vmatpush1.msra.mxu0 %v60
    %916 = vmatprep.subr.mxu0 %v56
    %917 = vmatpush1.msra.mxu0 %v55
    %918 = vmatprep.subr.mxu0 %v51
    %919 = vmatpush1.msra.mxu0 %v50
    %920 = vmatprep.subr.mxu0 %v46
    %921 = vmatpush1.msra.mxu0 %v45
    %922 = vmatprep.subr.mxu0 %v41
    %923 = vmatpush1.msra.mxu0 %v40
    %924 = vmatprep.subr.mxu0 %v196
    %925 = vmatpush2.msra.mxu0 %v195
    %926 = vmatprep.subr.mxu0 %v191
    %927 = vmatpush2.msra.mxu0 %v190
    %928 = vmatprep.subr.mxu0 %v186
    %929 = vmatpush2.msra.mxu0 %v185
    %930 = vmatprep.subr.mxu0 %v181
    %931 = vmatpush2.msra.mxu0 %v180
    %932 = vmatprep.subr.mxu0 %v176
    %933 = vmatpush2.msra.mxu0 %v175
    %934 = vmatprep.subr.mxu0 %v171
    %935 = vmatpush2.msra.mxu0 %v170
    %936 = vmatprep.subr.mxu0 %v166
    %937 = vmatpush2.msra.mxu0 %v165
    %938 = vmatprep.subr.mxu0 %v161
    %939 = vmatpush2.msra.mxu0 %v160
    %940 = vmatprep.subr.mxu0 %v156
    %941 = vmatpush2.msra.mxu0 %v155
    %942 = vmatprep.subr.mxu0 %v151
    %943 = vmatpush2.msra.mxu0 %v150
    %944 = vmatprep.subr.mxu0 %v146
    %945 = vmatpush2.msra.mxu0 %v145
    %946 = vmatprep.subr.mxu0 %v141
    %947 = vmatpush2.msra.mxu0 %v140
    %948 = vmatprep.subr.mxu0 %v136
    %949 = vmatpush2.msra.mxu0 %v135
    %950 = vmatprep.subr.mxu0 %v131
    %951 = vmatpush2.msra.mxu0 %v130
    %952 = vmatprep.subr.mxu0 %v126
    %953 = vmatpush2.msra.mxu0 %v125
    %954 = vmatprep.subr.mxu0 %v121
    %955 = vmatpush2.msra.mxu0 %v120
    %956 = vmatprep.mubr.f32.mxu0 %v849
    %957 = vmatmul.mubr.f32.gmra.mxu0 %v845
    %v958 = vpop.f32.mrf.mxu0
    %v959 = vadd.f32 0.0, %v958
    %v960 = vpop.f32.mrf.mxu0
    %v961 = vadd.f32 0.0, %v960
    %962 = vdwg.mxu0
    %963 = vmatprep.subr.mxu0 %v276
    %964 = vmatpush1.msra.mxu0 %v275
    %965 = vmatprep.subr.mxu0 %v271
    %966 = vmatpush1.msra.mxu0 %v270
    %967 = vmatprep.subr.mxu0 %v266
    %968 = vmatpush1.msra.mxu0 %v265
    %969 = vmatprep.subr.mxu0 %v261
    %970 = vmatpush1.msra.mxu0 %v260
    %971 = vmatprep.subr.mxu0 %v256
    %972 = vmatpush1.msra.mxu0 %v255
    %973 = vmatprep.subr.mxu0 %v251
    %974 = vmatpush1.msra.mxu0 %v250
    %975 = vmatprep.subr.mxu0 %v246
    %976 = vmatpush1.msra.mxu0 %v245
    %977 = vmatprep.subr.mxu0 %v241
    %978 = vmatpush1.msra.mxu0 %v240
    %979 = vmatprep.subr.mxu0 %v236
    %980 = vmatpush1.msra.mxu0 %v235
    %981 = vmatprep.subr.mxu0 %v231
    %982 = vmatpush1.msra.mxu0 %v230
    %983 = vmatprep.subr.mxu0 %v226
    %984 = vmatpush1.msra.mxu0 %v225
    %985 = vmatprep.subr.mxu0 %v221
    %986 = vmatpush1.msra.mxu0 %v220
    %987 = vmatprep.subr.mxu0 %v216
    %988 = vmatpush1.msra.mxu0 %v215
    %989 = vmatprep.subr.mxu0 %v211
    %990 = vmatpush1.msra.mxu0 %v210
    %991 = vmatprep.subr.mxu0 %v206
    %992 = vmatpush1.msra.mxu0 %v205
    %993 = vmatprep.subr.mxu0 %v201
    %994 = vmatpush1.msra.mxu0 %v200
    %995 = vmatprep.subr.mxu0 %v356
    %996 = vmatpush2.msra.mxu0 %v355
    %997 = vmatprep.subr.mxu0 %v351
    %998 = vmatpush2.msra.mxu0 %v350
    %999 = vmatprep.subr.mxu0 %v346
    %1000 = vmatpush2.msra.mxu0 %v345
    %1001 = vmatprep.subr.mxu0 %v341
    %1002 = vmatpush2.msra.mxu0 %v340
    %1003 = vmatprep.subr.mxu0 %v336
    %1004 = vmatpush2.msra.mxu0 %v335
    %1005 = vmatprep.subr.mxu0 %v331
    %1006 = vmatpush2.msra.mxu0 %v330
    %1007 = vmatprep.subr.mxu0 %v326
    %1008 = vmatpush2.msra.mxu0 %v325
    %1009 = vmatprep.subr.mxu0 %v321
    %1010 = vmatpush2.msra.mxu0 %v320
    %1011 = vmatprep.subr.mxu0 %v316
    %1012 = vmatpush2.msra.mxu0 %v315
    %1013 = vmatprep.subr.mxu0 %v311
    %1014 = vmatpush2.msra.mxu0 %v310
    %1015 = vmatprep.subr.mxu0 %v306
    %1016 = vmatpush2.msra.mxu0 %v305
    %1017 = vmatprep.subr.mxu0 %v301
    %1018 = vmatpush2.msra.mxu0 %v300
    %1019 = vmatprep.subr.mxu0 %v296
    %1020 = vmatpush2.msra.mxu0 %v295
    %1021 = vmatprep.subr.mxu0 %v291
    %1022 = vmatpush2.msra.mxu0 %v290
    %1023 = vmatprep.subr.mxu0 %v286
    %1024 = vmatpush2.msra.mxu0 %v285
    %1025 = vmatprep.subr.mxu0 %v281
    %1026 = vmatpush2.msra.mxu0 %v280
    %1027 = vmatprep.mubr.f32.mxu0 %v857
    %1028 = vmatmul.mubr.f32.gmra.mxu0 %v853
    %v1029 = vpop.f32.mrf.mxu0
    %v1030 = vadd.f32 %v959, %v1029
    %v1031 = vpop.f32.mrf.mxu0
    %v1032 = vadd.f32 %v961, %v1031
    %1033 = vdwg.mxu0
    %1034 = vmatprep.subr.mxu0 %v436
    %1035 = vmatpush1.msra.mxu0 %v435
    %1036 = vmatprep.subr.mxu0 %v431
    %1037 = vmatpush1.msra.mxu0 %v430
    %1038 = vmatprep.subr.mxu0 %v426
    %1039 = vmatpush1.msra.mxu0 %v425
    %1040 = vmatprep.subr.mxu0 %v421
    %1041 = vmatpush1.msra.mxu0 %v420
    %1042 = vmatprep.subr.mxu0 %v416
    %1043 = vmatpush1.msra.mxu0 %v415
    %1044 = vmatprep.subr.mxu0 %v411
    %1045 = vmatpush1.msra.mxu0 %v410
    %1046 = vmatprep.subr.mxu0 %v406
    %1047 = vmatpush1.msra.mxu0 %v405
    %1048 = vmatprep.subr.mxu0 %v401
    %1049 = vmatpush1.msra.mxu0 %v400
    %1050 = vmatprep.subr.mxu0 %v396
    %1051 = vmatpush1.msra.mxu0 %v395
    %1052 = vmatprep.subr.mxu0 %v391
    %1053 = vmatpush1.msra.mxu0 %v390
    %1054 = vmatprep.subr.mxu0 %v386
    %1055 = vmatpush1.msra.mxu0 %v385
    %1056 = vmatprep.subr.mxu0 %v381
    %1057 = vmatpush1.msra.mxu0 %v380
    %1058 = vmatprep.subr.mxu0 %v376
    %1059 = vmatpush1.msra.mxu0 %v375
    %1060 = vmatprep.subr.mxu0 %v371
    %1061 = vmatpush1.msra.mxu0 %v370
    %1062 = vmatprep.subr.mxu0 %v366
    %1063 = vmatpush1.msra.mxu0 %v365
    %1064 = vmatprep.subr.mxu0 %v361
    %1065 = vmatpush1.msra.mxu0 %v360
    %1066 = vmatprep.subr.mxu0 %v516
    %1067 = vmatpush2.msra.mxu0 %v515
    %1068 = vmatprep.subr.mxu0 %v511
    %1069 = vmatpush2.msra.mxu0 %v510
    %1070 = vmatprep.subr.mxu0 %v506
    %1071 = vmatpush2.msra.mxu0 %v505
    %1072 = vmatprep.subr.mxu0 %v501
    %1073 = vmatpush2.msra.mxu0 %v500
    %1074 = vmatprep.subr.mxu0 %v496
    %1075 = vmatpush2.msra.mxu0 %v495
    %1076 = vmatprep.subr.mxu0 %v491
    %1077 = vmatpush2.msra.mxu0 %v490
    %1078 = vmatprep.subr.mxu0 %v486
    %1079 = vmatpush2.msra.mxu0 %v485
    %1080 = vmatprep.subr.mxu0 %v481
    %1081 = vmatpush2.msra.mxu0 %v480
    %1082 = vmatprep.subr.mxu0 %v476
    %1083 = vmatpush2.msra.mxu0 %v475
    %1084 = vmatprep.subr.mxu0 %v471
    %1085 = vmatpush2.msra.mxu0 %v470
    %1086 = vmatprep.subr.mxu0 %v466
    %1087 = vmatpush2.msra.mxu0 %v465
    %1088 = vmatprep.subr.mxu0 %v461
    %1089 = vmatpush2.msra.mxu0 %v460
    %1090 = vmatprep.subr.mxu0 %v456
    %1091 = vmatpush2.msra.mxu0 %v455
    %1092 = vmatprep.subr.mxu0 %v451
    %1093 = vmatpush2.msra.mxu0 %v450
    %1094 = vmatprep.subr.mxu0 %v446
    %1095 = vmatpush2.msra.mxu0 %v445
    %1096 = vmatprep.subr.mxu0 %v441
    %1097 = vmatpush2.msra.mxu0 %v440
    %1098 = vmatprep.mubr.f32.mxu0 %v865
    %1099 = vmatmul.mubr.f32.gmra.mxu0 %v861
    %v1100 = vpop.f32.mrf.mxu0
    %v1101 = vadd.f32 %v1030, %v1100
    %v1102 = vpop.f32.mrf.mxu0
    %v1103 = vadd.f32 %v1032, %v1102
    %1104 = vdwg.mxu0
    %1105 = vmatprep.subr.mxu0 %v596
    %1106 = vmatpush1.msra.mxu0 %v595
    %1107 = vmatprep.subr.mxu0 %v591
    %1108 = vmatpush1.msra.mxu0 %v590
    %1109 = vmatprep.subr.mxu0 %v586
    %1110 = vmatpush1.msra.mxu0 %v585
    %1111 = vmatprep.subr.mxu0 %v581
    %1112 = vmatpush1.msra.mxu0 %v580
    %1113 = vmatprep.subr.mxu0 %v576
    %1114 = vmatpush1.msra.mxu0 %v575
    %1115 = vmatprep.subr.mxu0 %v571
    %1116 = vmatpush1.msra.mxu0 %v570
    %1117 = vmatprep.subr.mxu0 %v566
    %1118 = vmatpush1.msra.mxu0 %v565
    %1119 = vmatprep.subr.mxu0 %v561
    %1120 = vmatpush1.msra.mxu0 %v560
    %1121 = vmatprep.subr.mxu0 %v556
    %1122 = vmatpush1.msra.mxu0 %v555
    %1123 = vmatprep.subr.mxu0 %v551
    %1124 = vmatpush1.msra.mxu0 %v550
    %1125 = vmatprep.subr.mxu0 %v546
    %1126 = vmatpush1.msra.mxu0 %v545
    %1127 = vmatprep.subr.mxu0 %v541
    %1128 = vmatpush1.msra.mxu0 %v540
    %1129 = vmatprep.subr.mxu0 %v536
    %1130 = vmatpush1.msra.mxu0 %v535
    %1131 = vmatprep.subr.mxu0 %v531
    %1132 = vmatpush1.msra.mxu0 %v530
    %1133 = vmatprep.subr.mxu0 %v526
    %1134 = vmatpush1.msra.mxu0 %v525
    %1135 = vmatprep.subr.mxu0 %v521
    %1136 = vmatpush1.msra.mxu0 %v520
    %1137 = vmatprep.subr.mxu0 %v676
    %1138 = vmatpush2.msra.mxu0 %v675
    %1139 = vmatprep.subr.mxu0 %v671
    %1140 = vmatpush2.msra.mxu0 %v670
    %1141 = vmatprep.subr.mxu0 %v666
    %1142 = vmatpush2.msra.mxu0 %v665
    %1143 = vmatprep.subr.mxu0 %v661
    %1144 = vmatpush2.msra.mxu0 %v660
    %1145 = vmatprep.subr.mxu0 %v656
    %1146 = vmatpush2.msra.mxu0 %v655
    %1147 = vmatprep.subr.mxu0 %v651
    %1148 = vmatpush2.msra.mxu0 %v650
    %1149 = vmatprep.subr.mxu0 %v646
    %1150 = vmatpush2.msra.mxu0 %v645
    %1151 = vmatprep.subr.mxu0 %v641
    %1152 = vmatpush2.msra.mxu0 %v640
    %1153 = vmatprep.subr.mxu0 %v636
    %1154 = vmatpush2.msra.mxu0 %v635
    %1155 = vmatprep.subr.mxu0 %v631
    %1156 = vmatpush2.msra.mxu0 %v630
    %1157 = vmatprep.subr.mxu0 %v626
    %1158 = vmatpush2.msra.mxu0 %v625
    %1159 = vmatprep.subr.mxu0 %v621
    %1160 = vmatpush2.msra.mxu0 %v620
    %1161 = vmatprep.subr.mxu0 %v616
    %1162 = vmatpush2.msra.mxu0 %v615
    %1163 = vmatprep.subr.mxu0 %v611
    %1164 = vmatpush2.msra.mxu0 %v610
    %1165 = vmatprep.subr.mxu0 %v606
    %1166 = vmatpush2.msra.mxu0 %v605
    %1167 = vmatprep.subr.mxu0 %v601
    %1168 = vmatpush2.msra.mxu0 %v600
    %1169 = vmatprep.mubr.f32.mxu0 %v873
    %1170 = vmatmul.mubr.f32.gmra.mxu0 %v869
    %v1171 = vpop.f32.mrf.mxu0
    %v1172 = vadd.f32 %v1101, %v1171
    %v1173 = vpop.f32.mrf.mxu0
    %v1174 = vadd.f32 %v1103, %v1173
    %1175 = vdwg.mxu0
    %1176 = vmatprep.subr.mxu0 %v756
    %1177 = vmatpush1.msra.mxu0 %v755
    %1178 = vmatprep.subr.mxu0 %v751
    %1179 = vmatpush1.msra.mxu0 %v750
    %1180 = vmatprep.subr.mxu0 %v746
    %1181 = vmatpush1.msra.mxu0 %v745
    %1182 = vmatprep.subr.mxu0 %v741
    %1183 = vmatpush1.msra.mxu0 %v740
    %1184 = vmatprep.subr.mxu0 %v736
    %1185 = vmatpush1.msra.mxu0 %v735
    %1186 = vmatprep.subr.mxu0 %v731
    %1187 = vmatpush1.msra.mxu0 %v730
    %1188 = vmatprep.subr.mxu0 %v726
    %1189 = vmatpush1.msra.mxu0 %v725
    %1190 = vmatprep.subr.mxu0 %v721
    %1191 = vmatpush1.msra.mxu0 %v720
    %1192 = vmatprep.subr.mxu0 %v716
    %1193 = vmatpush1.msra.mxu0 %v715
    %1194 = vmatprep.subr.mxu0 %v711
    %1195 = vmatpush1.msra.mxu0 %v710
    %1196 = vmatprep.subr.mxu0 %v706
    %1197 = vmatpush1.msra.mxu0 %v705
    %1198 = vmatprep.subr.mxu0 %v701
    %1199 = vmatpush1.msra.mxu0 %v700
    %1200 = vmatprep.subr.mxu0 %v696
    %1201 = vmatpush1.msra.mxu0 %v695
    %1202 = vmatprep.subr.mxu0 %v691
    %1203 = vmatpush1.msra.mxu0 %v690
    %1204 = vmatprep.subr.mxu0 %v686
    %1205 = vmatpush1.msra.mxu0 %v685
    %1206 = vmatprep.subr.mxu0 %v681
    %1207 = vmatpush1.msra.mxu0 %v680
    %1208 = vmatprep.subr.mxu0 %v836
    %1209 = vmatpush2.msra.mxu0 %v835
    %1210 = vmatprep.subr.mxu0 %v831
    %1211 = vmatpush2.msra.mxu0 %v830
    %1212 = vmatprep.subr.mxu0 %v826
    %1213 = vmatpush2.msra.mxu0 %v825
    %1214 = vmatprep.subr.mxu0 %v821
    %1215 = vmatpush2.msra.mxu0 %v820
    %1216 = vmatprep.subr.mxu0 %v816
    %1217 = vmatpush2.msra.mxu0 %v815
    %1218 = vmatprep.subr.mxu0 %v811
    %1219 = vmatpush2.msra.mxu0 %v810
    %1220 = vmatprep.subr.mxu0 %v806
    %1221 = vmatpush2.msra.mxu0 %v805
    %1222 = vmatprep.subr.mxu0 %v801
    %1223 = vmatpush2.msra.mxu0 %v800
    %1224 = vmatprep.subr.mxu0 %v796
    %1225 = vmatpush2.msra.mxu0 %v795
    %1226 = vmatprep.subr.mxu0 %v791
    %1227 = vmatpush2.msra.mxu0 %v790
    %1228 = vmatprep.subr.mxu0 %v786
    %1229 = vmatpush2.msra.mxu0 %v785
    %1230 = vmatprep.subr.mxu0 %v781
    %1231 = vmatpush2.msra.mxu0 %v780
    %1232 = vmatprep.subr.mxu0 %v776
    %1233 = vmatpush2.msra.mxu0 %v775
    %1234 = vmatprep.subr.mxu0 %v771
    %1235 = vmatpush2.msra.mxu0 %v770
    %1236 = vmatprep.subr.mxu0 %v766
    %1237 = vmatpush2.msra.mxu0 %v765
    %1238 = vmatprep.subr.mxu0 %v761
    %1239 = vmatpush2.msra.mxu0 %v760
    %1240 = vmatprep.mubr.f32.mxu0 %v881
    %1241 = vmatmul.mubr.f32.gmra.mxu0 %v877
    %v1242 = vpop.f32.mrf.mxu0
    %v1243 = vadd.f32 %v1172, %v1242
    %v1244 = vpop.f32.mrf.mxu0
    %v1245 = vadd.f32 %v1174, %v1244
    %1246 = vdwg.mxu0
    %1247 = vmatprep.subr.mxu0 %v118
    %1248 = vmatpush1.msra.mxu0 %v117
    %1249 = vmatprep.subr.mxu0 %v113
    %1250 = vmatpush1.msra.mxu0 %v112
    %1251 = vmatprep.subr.mxu0 %v108
    %1252 = vmatpush1.msra.mxu0 %v107
    %1253 = vmatprep.subr.mxu0 %v103
    %1254 = vmatpush1.msra.mxu0 %v102
    %1255 = vmatprep.subr.mxu0 %v98
    %1256 = vmatpush1.msra.mxu0 %v97
    %1257 = vmatprep.subr.mxu0 %v93
    %1258 = vmatpush1.msra.mxu0 %v92
    %1259 = vmatprep.subr.mxu0 %v88
    %1260 = vmatpush1.msra.mxu0 %v87
    %1261 = vmatprep.subr.mxu0 %v83
    %1262 = vmatpush1.msra.mxu0 %v82
    %1263 = vmatprep.subr.mxu0 %v78
    %1264 = vmatpush1.msra.mxu0 %v77
    %1265 = vmatprep.subr.mxu0 %v73
    %1266 = vmatpush1.msra.mxu0 %v72
    %1267 = vmatprep.subr.mxu0 %v68
    %1268 = vmatpush1.msra.mxu0 %v67
    %1269 = vmatprep.subr.mxu0 %v63
    %1270 = vmatpush1.msra.mxu0 %v62
    %1271 = vmatprep.subr.mxu0 %v58
    %1272 = vmatpush1.msra.mxu0 %v57
    %1273 = vmatprep.subr.mxu0 %v53
    %1274 = vmatpush1.msra.mxu0 %v52
    %1275 = vmatprep.subr.mxu0 %v48
    %1276 = vmatpush1.msra.mxu0 %v47
    %1277 = vmatprep.subr.mxu0 %v43
    %1278 = vmatpush1.msra.mxu0 %v42
    %1279 = vmatprep.subr.mxu0 %v198
    %1280 = vmatpush2.msra.mxu0 %v197
    %1281 = vmatprep.subr.mxu0 %v193
    %1282 = vmatpush2.msra.mxu0 %v192
    %1283 = vmatprep.subr.mxu0 %v188
    %1284 = vmatpush2.msra.mxu0 %v187
    %1285 = vmatprep.subr.mxu0 %v183
    %1286 = vmatpush2.msra.mxu0 %v182
    %1287 = vmatprep.subr.mxu0 %v178
    %1288 = vmatpush2.msra.mxu0 %v177
    %1289 = vmatprep.subr.mxu0 %v173
    %1290 = vmatpush2.msra.mxu0 %v172
    %1291 = vmatprep.subr.mxu0 %v168
    %1292 = vmatpush2.msra.mxu0 %v167
    %1293 = vmatprep.subr.mxu0 %v163
    %1294 = vmatpush2.msra.mxu0 %v162
    %1295 = vmatprep.subr.mxu0 %v158
    %1296 = vmatpush2.msra.mxu0 %v157
    %1297 = vmatprep.subr.mxu0 %v153
    %1298 = vmatpush2.msra.mxu0 %v152
    %1299 = vmatprep.subr.mxu0 %v148
    %1300 = vmatpush2.msra.mxu0 %v147
    %1301 = vmatprep.subr.mxu0 %v143
    %1302 = vmatpush2.msra.mxu0 %v142
    %1303 = vmatprep.subr.mxu0 %v138
    %1304 = vmatpush2.msra.mxu0 %v137
    %1305 = vmatprep.subr.mxu0 %v133
    %1306 = vmatpush2.msra.mxu0 %v132
    %1307 = vmatprep.subr.mxu0 %v128
    %1308 = vmatpush2.msra.mxu0 %v127
    %1309 = vmatprep.subr.mxu0 %v123
    %1310 = vmatpush2.msra.mxu0 %v122
    %1311 = vmatprep.mubr.f32.mxu0 %v849
    %1312 = vmatmul.mubr.f32.gmra.mxu0 %v845
    %v1313 = vpop.f32.mrf.mxu0
    %v1314 = vadd.f32 0.0, %v1313
    %v1315 = vpop.f32.mrf.mxu0
    %v1316 = vadd.f32 0.0, %v1315
    %1317 = vdwg.mxu0
    %1318 = vmatprep.subr.mxu0 %v278
    %1319 = vmatpush1.msra.mxu0 %v277
    %1320 = vmatprep.subr.mxu0 %v273
    %1321 = vmatpush1.msra.mxu0 %v272
    %1322 = vmatprep.subr.mxu0 %v268
    %1323 = vmatpush1.msra.mxu0 %v267
    %1324 = vmatprep.subr.mxu0 %v263
    %1325 = vmatpush1.msra.mxu0 %v262
    %1326 = vmatprep.subr.mxu0 %v258
    %1327 = vmatpush1.msra.mxu0 %v257
    %1328 = vmatprep.subr.mxu0 %v253
    %1329 = vmatpush1.msra.mxu0 %v252
    %1330 = vmatprep.subr.mxu0 %v248
    %1331 = vmatpush1.msra.mxu0 %v247
    %1332 = vmatprep.subr.mxu0 %v243
    %1333 = vmatpush1.msra.mxu0 %v242
    %1334 = vmatprep.subr.mxu0 %v238
    %1335 = vmatpush1.msra.mxu0 %v237
    %1336 = vmatprep.subr.mxu0 %v233
    %1337 = vmatpush1.msra.mxu0 %v232
    %1338 = vmatprep.subr.mxu0 %v228
    %1339 = vmatpush1.msra.mxu0 %v227
    %1340 = vmatprep.subr.mxu0 %v223
    %1341 = vmatpush1.msra.mxu0 %v222
    %1342 = vmatprep.subr.mxu0 %v218
    %1343 = vmatpush1.msra.mxu0 %v217
    %1344 = vmatprep.subr.mxu0 %v213
    %1345 = vmatpush1.msra.mxu0 %v212
    %1346 = vmatprep.subr.mxu0 %v208
    %1347 = vmatpush1.msra.mxu0 %v207
    %1348 = vmatprep.subr.mxu0 %v203
    %1349 = vmatpush1.msra.mxu0 %v202
    %1350 = vmatprep.subr.mxu0 %v358
    %1351 = vmatpush2.msra.mxu0 %v357
    %1352 = vmatprep.subr.mxu0 %v353
    %1353 = vmatpush2.msra.mxu0 %v352
    %1354 = vmatprep.subr.mxu0 %v348
    %1355 = vmatpush2.msra.mxu0 %v347
    %1356 = vmatprep.subr.mxu0 %v343
    %1357 = vmatpush2.msra.mxu0 %v342
    %1358 = vmatprep.subr.mxu0 %v338
    %1359 = vmatpush2.msra.mxu0 %v337
    %1360 = vmatprep.subr.mxu0 %v333
    %1361 = vmatpush2.msra.mxu0 %v332
    %1362 = vmatprep.subr.mxu0 %v328
    %1363 = vmatpush2.msra.mxu0 %v327
    %1364 = vmatprep.subr.mxu0 %v323
    %1365 = vmatpush2.msra.mxu0 %v322
    %1366 = vmatprep.subr.mxu0 %v318
    %1367 = vmatpush2.msra.mxu0 %v317
    %1368 = vmatprep.subr.mxu0 %v313
    %1369 = vmatpush2.msra.mxu0 %v312
    %1370 = vmatprep.subr.mxu0 %v308
    %1371 = vmatpush2.msra.mxu0 %v307
    %1372 = vmatprep.subr.mxu0 %v303
    %1373 = vmatpush2.msra.mxu0 %v302
    %1374 = vmatprep.subr.mxu0 %v298
    %1375 = vmatpush2.msra.mxu0 %v297
    %1376 = vmatprep.subr.mxu0 %v293
    %1377 = vmatpush2.msra.mxu0 %v292
    %1378 = vmatprep.subr.mxu0 %v288
    %1379 = vmatpush2.msra.mxu0 %v287
    %1380 = vmatprep.subr.mxu0 %v283
    %1381 = vmatpush2.msra.mxu0 %v282
    %1382 = vmatprep.mubr.f32.mxu0 %v857
    %1383 = vmatmul.mubr.f32.gmra.mxu0 %v853
    %v1384 = vpop.f32.mrf.mxu0
    %v1385 = vadd.f32 %v1314, %v1384
    %v1386 = vpop.f32.mrf.mxu0
    %v1387 = vadd.f32 %v1316, %v1386
    %1388 = vdwg.mxu0
    %1389 = vmatprep.subr.mxu0 %v438
    %1390 = vmatpush1.msra.mxu0 %v437
    %1391 = vmatprep.subr.mxu0 %v433
    %1392 = vmatpush1.msra.mxu0 %v432
    %1393 = vmatprep.subr.mxu0 %v428
    %1394 = vmatpush1.msra.mxu0 %v427
    %1395 = vmatprep.subr.mxu0 %v423
    %1396 = vmatpush1.msra.mxu0 %v422
    %1397 = vmatprep.subr.mxu0 %v418
    %1398 = vmatpush1.msra.mxu0 %v417
    %1399 = vmatprep.subr.mxu0 %v413
    %1400 = vmatpush1.msra.mxu0 %v412
    %1401 = vmatprep.subr.mxu0 %v408
    %1402 = vmatpush1.msra.mxu0 %v407
    %1403 = vmatprep.subr.mxu0 %v403
    %1404 = vmatpush1.msra.mxu0 %v402
    %1405 = vmatprep.subr.mxu0 %v398
    %1406 = vmatpush1.msra.mxu0 %v397
    %1407 = vmatprep.subr.mxu0 %v393
    %1408 = vmatpush1.msra.mxu0 %v392
    %1409 = vmatprep.subr.mxu0 %v388
    %1410 = vmatpush1.msra.mxu0 %v387
    %1411 = vmatprep.subr.mxu0 %v383
    %1412 = vmatpush1.msra.mxu0 %v382
    %1413 = vmatprep.subr.mxu0 %v378
    %1414 = vmatpush1.msra.mxu0 %v377
    %1415 = vmatprep.subr.mxu0 %v373
    %1416 = vmatpush1.msra.mxu0 %v372
    %1417 = vmatprep.subr.mxu0 %v368
    %1418 = vmatpush1.msra.mxu0 %v367
    %1419 = vmatprep.subr.mxu0 %v363
    %1420 = vmatpush1.msra.mxu0 %v362
    %1421 = vmatprep.subr.mxu0 %v518
    %1422 = vmatpush2.msra.mxu0 %v517
    %1423 = vmatprep.subr.mxu0 %v513
    %1424 = vmatpush2.msra.mxu0 %v512
    %1425 = vmatprep.subr.mxu0 %v508
    %1426 = vmatpush2.msra.mxu0 %v507
    %1427 = vmatprep.subr.mxu0 %v503
    %1428 = vmatpush2.msra.mxu0 %v502
    %1429 = vmatprep.subr.mxu0 %v498
    %1430 = vmatpush2.msra.mxu0 %v497
    %1431 = vmatprep.subr.mxu0 %v493
    %1432 = vmatpush2.msra.mxu0 %v492
    %1433 = vmatprep.subr.mxu0 %v488
    %1434 = vmatpush2.msra.mxu0 %v487
    %1435 = vmatprep.subr.mxu0 %v483
    %1436 = vmatpush2.msra.mxu0 %v482
    %1437 = vmatprep.subr.mxu0 %v478
    %1438 = vmatpush2.msra.mxu0 %v477
    %1439 = vmatprep.subr.mxu0 %v473
    %1440 = vmatpush2.msra.mxu0 %v472
    %1441 = vmatprep.subr.mxu0 %v468
    %1442 = vmatpush2.msra.mxu0 %v467
    %1443 = vmatprep.subr.mxu0 %v463
    %1444 = vmatpush2.msra.mxu0 %v462
    %1445 = vmatprep.subr.mxu0 %v458
    %1446 = vmatpush2.msra.mxu0 %v457
    %1447 = vmatprep.subr.mxu0 %v453
    %1448 = vmatpush2.msra.mxu0 %v452
    %1449 = vmatprep.subr.mxu0 %v448
    %1450 = vmatpush2.msra.mxu0 %v447
    %1451 = vmatprep.subr.mxu0 %v443
    %1452 = vmatpush2.msra.mxu0 %v442
    %1453 = vmatprep.mubr.f32.mxu0 %v865
    %1454 = vmatmul.mubr.f32.gmra.mxu0 %v861
    %v1455 = vpop.f32.mrf.mxu0
    %v1456 = vadd.f32 %v1385, %v1455
    %v1457 = vpop.f32.mrf.mxu0
    %v1458 = vadd.f32 %v1387, %v1457
    %1459 = vdwg.mxu0
    %1460 = vmatprep.subr.mxu0 %v598
    %1461 = vmatpush1.msra.mxu0 %v597
    %1462 = vmatprep.subr.mxu0 %v593
    %1463 = vmatpush1.msra.mxu0 %v592
    %1464 = vmatprep.subr.mxu0 %v588
    %1465 = vmatpush1.msra.mxu0 %v587
    %1466 = vmatprep.subr.mxu0 %v583
    %1467 = vmatpush1.msra.mxu0 %v582
    %1468 = vmatprep.subr.mxu0 %v578
    %1469 = vmatpush1.msra.mxu0 %v577
    %1470 = vmatprep.subr.mxu0 %v573
    %1471 = vmatpush1.msra.mxu0 %v572
    %1472 = vmatprep.subr.mxu0 %v568
    %1473 = vmatpush1.msra.mxu0 %v567
    %1474 = vmatprep.subr.mxu0 %v563
    %1475 = vmatpush1.msra.mxu0 %v562
    %1476 = vmatprep.subr.mxu0 %v558
    %1477 = vmatpush1.msra.mxu0 %v557
    %1478 = vmatprep.subr.mxu0 %v553
    %1479 = vmatpush1.msra.mxu0 %v552
    %1480 = vmatprep.subr.mxu0 %v548
    %1481 = vmatpush1.msra.mxu0 %v547
    %1482 = vmatprep.subr.mxu0 %v543
    %1483 = vmatpush1.msra.mxu0 %v542
    %1484 = vmatprep.subr.mxu0 %v538
    %1485 = vmatpush1.msra.mxu0 %v537
    %1486 = vmatprep.subr.mxu0 %v533
    %1487 = vmatpush1.msra.mxu0 %v532
    %1488 = vmatprep.subr.mxu0 %v528
    %1489 = vmatpush1.msra.mxu0 %v527
    %1490 = vmatprep.subr.mxu0 %v523
    %1491 = vmatpush1.msra.mxu0 %v522
    %1492 = vmatprep.subr.mxu0 %v678
    %1493 = vmatpush2.msra.mxu0 %v677
    %1494 = vmatprep.subr.mxu0 %v673
    %1495 = vmatpush2.msra.mxu0 %v672
    %1496 = vmatprep.subr.mxu0 %v668
    %1497 = vmatpush2.msra.mxu0 %v667
    %1498 = vmatprep.subr.mxu0 %v663
    %1499 = vmatpush2.msra.mxu0 %v662
    %1500 = vmatprep.subr.mxu0 %v658
    %1501 = vmatpush2.msra.mxu0 %v657
    %1502 = vmatprep.subr.mxu0 %v653
    %1503 = vmatpush2.msra.mxu0 %v652
    %1504 = vmatprep.subr.mxu0 %v648
    %1505 = vmatpush2.msra.mxu0 %v647
    %1506 = vmatprep.subr.mxu0 %v643
    %1507 = vmatpush2.msra.mxu0 %v642
    %1508 = vmatprep.subr.mxu0 %v638
    %1509 = vmatpush2.msra.mxu0 %v637
    %1510 = vmatprep.subr.mxu0 %v633
    %1511 = vmatpush2.msra.mxu0 %v632
    %1512 = vmatprep.subr.mxu0 %v628
    %1513 = vmatpush2.msra.mxu0 %v627
    %1514 = vmatprep.subr.mxu0 %v623
    %1515 = vmatpush2.msra.mxu0 %v622
    %1516 = vmatprep.subr.mxu0 %v618
    %1517 = vmatpush2.msra.mxu0 %v617
    %1518 = vmatprep.subr.mxu0 %v613
    %1519 = vmatpush2.msra.mxu0 %v612
    %1520 = vmatprep.subr.mxu0 %v608
    %1521 = vmatpush2.msra.mxu0 %v607
    %1522 = vmatprep.subr.mxu0 %v603
    %1523 = vmatpush2.msra.mxu0 %v602
    %1524 = vmatprep.mubr.f32.mxu0 %v873
    %1525 = vmatmul.mubr.f32.gmra.mxu0 %v869
    %v1526 = vpop.f32.mrf.mxu0
    %v1527 = vadd.f32 %v1456, %v1526
    %v1528 = vpop.f32.mrf.mxu0
    %v1529 = vadd.f32 %v1458, %v1528
    %1530 = vdwg.mxu0
    %1531 = vmatprep.subr.mxu0 %v758
    %1532 = vmatpush1.msra.mxu0 %v757
    %1533 = vmatprep.subr.mxu0 %v753
    %1534 = vmatpush1.msra.mxu0 %v752
    %1535 = vmatprep.subr.mxu0 %v748
    %1536 = vmatpush1.msra.mxu0 %v747
    %1537 = vmatprep.subr.mxu0 %v743
    %1538 = vmatpush1.msra.mxu0 %v742
    %1539 = vmatprep.subr.mxu0 %v738
    %1540 = vmatpush1.msra.mxu0 %v737
    %1541 = vmatprep.subr.mxu0 %v733
    %1542 = vmatpush1.msra.mxu0 %v732
    %1543 = vmatprep.subr.mxu0 %v728
    %1544 = vmatpush1.msra.mxu0 %v727
    %1545 = vmatprep.subr.mxu0 %v723
    %1546 = vmatpush1.msra.mxu0 %v722
    %1547 = vmatprep.subr.mxu0 %v718
    %1548 = vmatpush1.msra.mxu0 %v717
    %1549 = vmatprep.subr.mxu0 %v713
    %1550 = vmatpush1.msra.mxu0 %v712
    %1551 = vmatprep.subr.mxu0 %v708
    %1552 = vmatpush1.msra.mxu0 %v707
    %1553 = vmatprep.subr.mxu0 %v703
    %1554 = vmatpush1.msra.mxu0 %v702
    %1555 = vmatprep.subr.mxu0 %v698
    %1556 = vmatpush1.msra.mxu0 %v697
    %1557 = vmatprep.subr.mxu0 %v693
    %1558 = vmatpush1.msra.mxu0 %v692
    %1559 = vmatprep.subr.mxu0 %v688
    %1560 = vmatpush1.msra.mxu0 %v687
    %1561 = vmatprep.subr.mxu0 %v683
    %1562 = vmatpush1.msra.mxu0 %v682
    %1563 = vmatprep.subr.mxu0 %v838
    %1564 = vmatpush2.msra.mxu0 %v837
    %1565 = vmatprep.subr.mxu0 %v833
    %1566 = vmatpush2.msra.mxu0 %v832
    %1567 = vmatprep.subr.mxu0 %v828
    %1568 = vmatpush2.msra.mxu0 %v827
    %1569 = vmatprep.subr.mxu0 %v823
    %1570 = vmatpush2.msra.mxu0 %v822
    %1571 = vmatprep.subr.mxu0 %v818
    %1572 = vmatpush2.msra.mxu0 %v817
    %1573 = vmatprep.subr.mxu0 %v813
    %1574 = vmatpush2.msra.mxu0 %v812
    %1575 = vmatprep.subr.mxu0 %v808
    %1576 = vmatpush2.msra.mxu0 %v807
    %1577 = vmatprep.subr.mxu0 %v803
    %1578 = vmatpush2.msra.mxu0 %v802
    %1579 = vmatprep.subr.mxu0 %v798
    %1580 = vmatpush2.msra.mxu0 %v797
    %1581 = vmatprep.subr.mxu0 %v793
    %1582 = vmatpush2.msra.mxu0 %v792
    %1583 = vmatprep.subr.mxu0 %v788
    %1584 = vmatpush2.msra.mxu0 %v787
    %1585 = vmatprep.subr.mxu0 %v783
    %1586 = vmatpush2.msra.mxu0 %v782
    %1587 = vmatprep.subr.mxu0 %v778
    %1588 = vmatpush2.msra.mxu0 %v777
    %1589 = vmatprep.subr.mxu0 %v773
    %1590 = vmatpush2.msra.mxu0 %v772
    %1591 = vmatprep.subr.mxu0 %v768
    %1592 = vmatpush2.msra.mxu0 %v767
    %1593 = vmatprep.subr.mxu0 %v763
    %1594 = vmatpush2.msra.mxu0 %v762
    %1595 = vmatprep.mubr.f32.mxu0 %v881
    %1596 = vmatmul.mubr.f32.gmra.mxu0 %v877
    %v1597 = vpop.f32.mrf.mxu0
    %v1598 = vadd.f32 %v1527, %v1597
    %v1599 = vpop.f32.mrf.mxu0
    %v1600 = vadd.f32 %v1529, %v1599
    %1601 = vdwg.mxu0
    %1602 = vmatprep.subr.mxu0 0.0
    %1603 = vmatpush1.msra.mxu0 %v119
    %1604 = vmatprep.subr.mxu0 0.0
    %1605 = vmatpush1.msra.mxu0 %v114
    %1606 = vmatprep.subr.mxu0 0.0
    %1607 = vmatpush1.msra.mxu0 %v109
    %1608 = vmatprep.subr.mxu0 0.0
    %1609 = vmatpush1.msra.mxu0 %v104
    %1610 = vmatprep.subr.mxu0 0.0
    %1611 = vmatpush1.msra.mxu0 %v99
    %1612 = vmatprep.subr.mxu0 0.0
    %1613 = vmatpush1.msra.mxu0 %v94
    %1614 = vmatprep.subr.mxu0 0.0
    %1615 = vmatpush1.msra.mxu0 %v89
    %1616 = vmatprep.subr.mxu0 0.0
    %1617 = vmatpush1.msra.mxu0 %v84
    %1618 = vmatprep.subr.mxu0 0.0
    %1619 = vmatpush1.msra.mxu0 %v79
    %1620 = vmatprep.subr.mxu0 0.0
    %1621 = vmatpush1.msra.mxu0 %v74
    %1622 = vmatprep.subr.mxu0 0.0
    %1623 = vmatpush1.msra.mxu0 %v69
    %1624 = vmatprep.subr.mxu0 0.0
    %1625 = vmatpush1.msra.mxu0 %v64
    %1626 = vmatprep.subr.mxu0 0.0
    %1627 = vmatpush1.msra.mxu0 %v59
    %1628 = vmatprep.subr.mxu0 0.0
    %1629 = vmatpush1.msra.mxu0 %v54
    %1630 = vmatprep.subr.mxu0 0.0
    %1631 = vmatpush1.msra.mxu0 %v49
    %1632 = vmatprep.subr.mxu0 0.0
    %1633 = vmatpush1.msra.mxu0 %v44
    %1634 = vmatprep.subr.mxu0 0.0
    %1635 = vmatpush2.msra.mxu0 %v199
    %1636 = vmatprep.subr.mxu0 0.0
    %1637 = vmatpush2.msra.mxu0 %v194
    %1638 = vmatprep.subr.mxu0 0.0
    %1639 = vmatpush2.msra.mxu0 %v189
    %1640 = vmatprep.subr.mxu0 0.0
    %1641 = vmatpush2.msra.mxu0 %v184
    %1642 = vmatprep.subr.mxu0 0.0
    %1643 = vmatpush2.msra.mxu0 %v179
    %1644 = vmatprep.subr.mxu0 0.0
    %1645 = vmatpush2.msra.mxu0 %v174
    %1646 = vmatprep.subr.mxu0 0.0
    %1647 = vmatpush2.msra.mxu0 %v169
    %1648 = vmatprep.subr.mxu0 0.0
    %1649 = vmatpush2.msra.mxu0 %v164
    %1650 = vmatprep.subr.mxu0 0.0
    %1651 = vmatpush2.msra.mxu0 %v159
    %1652 = vmatprep.subr.mxu0 0.0
    %1653 = vmatpush2.msra.mxu0 %v154
    %1654 = vmatprep.subr.mxu0 0.0
    %1655 = vmatpush2.msra.mxu0 %v149
    %1656 = vmatprep.subr.mxu0 0.0
    %1657 = vmatpush2.msra.mxu0 %v144
    %1658 = vmatprep.subr.mxu0 0.0
    %1659 = vmatpush2.msra.mxu0 %v139
    %1660 = vmatprep.subr.mxu0 0.0
    %1661 = vmatpush2.msra.mxu0 %v134
    %1662 = vmatprep.subr.mxu0 0.0
    %1663 = vmatpush2.msra.mxu0 %v129
    %1664 = vmatprep.subr.mxu0 0.0
    %1665 = vmatpush2.msra.mxu0 %v124
    %1666 = vmatprep.mubr.f32.mxu0 %v849
    %1667 = vmatmul.mubr.f32.gmra.mxu0 %v845
    %v1668 = vpop.f32.mrf.mxu0
    %v1669 = vadd.f32 0.0, %v1668
    %v1670 = vpop.f32.mrf.mxu0
    %1671 = vdwg.mxu0
    %1672 = vmatprep.subr.mxu0 0.0
    %1673 = vmatpush1.msra.mxu0 %v279
    %1674 = vmatprep.subr.mxu0 0.0
    %1675 = vmatpush1.msra.mxu0 %v274
    %1676 = vmatprep.subr.mxu0 0.0
    %1677 = vmatpush1.msra.mxu0 %v269
    %1678 = vmatprep.subr.mxu0 0.0
    %1679 = vmatpush1.msra.mxu0 %v264
    %1680 = vmatprep.subr.mxu0 0.0
    %1681 = vmatpush1.msra.mxu0 %v259
    %1682 = vmatprep.subr.mxu0 0.0
    %1683 = vmatpush1.msra.mxu0 %v254
    %1684 = vmatprep.subr.mxu0 0.0
    %1685 = vmatpush1.msra.mxu0 %v249
    %1686 = vmatprep.subr.mxu0 0.0
    %1687 = vmatpush1.msra.mxu0 %v244
    %1688 = vmatprep.subr.mxu0 0.0
    %1689 = vmatpush1.msra.mxu0 %v239
    %1690 = vmatprep.subr.mxu0 0.0
    %1691 = vmatpush1.msra.mxu0 %v234
    %1692 = vmatprep.subr.mxu0 0.0
    %1693 = vmatpush1.msra.mxu0 %v229
    %1694 = vmatprep.subr.mxu0 0.0
    %1695 = vmatpush1.msra.mxu0 %v224
    %1696 = vmatprep.subr.mxu0 0.0
    %1697 = vmatpush1.msra.mxu0 %v219
    %1698 = vmatprep.subr.mxu0 0.0
    %1699 = vmatpush1.msra.mxu0 %v214
    %1700 = vmatprep.subr.mxu0 0.0
    %1701 = vmatpush1.msra.mxu0 %v209
    %1702 = vmatprep.subr.mxu0 0.0
    %1703 = vmatpush1.msra.mxu0 %v204
    %1704 = vmatprep.subr.mxu0 0.0
    %1705 = vmatpush2.msra.mxu0 %v359
    %1706 = vmatprep.subr.mxu0 0.0
    %1707 = vmatpush2.msra.mxu0 %v354
    %1708 = vmatprep.subr.mxu0 0.0
    %1709 = vmatpush2.msra.mxu0 %v349
    %1710 = vmatprep.subr.mxu0 0.0
    %1711 = vmatpush2.msra.mxu0 %v344
    %1712 = vmatprep.subr.mxu0 0.0
    %1713 = vmatpush2.msra.mxu0 %v339
    %1714 = vmatprep.subr.mxu0 0.0
    %1715 = vmatpush2.msra.mxu0 %v334
    %1716 = vmatprep.subr.mxu0 0.0
    %1717 = vmatpush2.msra.mxu0 %v329
    %1718 = vmatprep.subr.mxu0 0.0
    %1719 = vmatpush2.msra.mxu0 %v324
    %1720 = vmatprep.subr.mxu0 0.0
    %1721 = vmatpush2.msra.mxu0 %v319
    %1722 = vmatprep.subr.mxu0 0.0
    %1723 = vmatpush2.msra.mxu0 %v314
    %1724 = vmatprep.subr.mxu0 0.0
    %1725 = vmatpush2.msra.mxu0 %v309
    %1726 = vmatprep.subr.mxu0 0.0
    %1727 = vmatpush2.msra.mxu0 %v304
    %1728 = vmatprep.subr.mxu0 0.0
    %1729 = vmatpush2.msra.mxu0 %v299
    %1730 = vmatprep.subr.mxu0 0.0
    %1731 = vmatpush2.msra.mxu0 %v294
    %1732 = vmatprep.subr.mxu0 0.0
    %1733 = vmatpush2.msra.mxu0 %v289
    %1734 = vmatprep.subr.mxu0 0.0
    %1735 = vmatpush2.msra.mxu0 %v284
    %1736 = vmatprep.mubr.f32.mxu0 %v857
    %1737 = vmatmul.mubr.f32.gmra.mxu0 %v853
    %v1738 = vpop.f32.mrf.mxu0
    %v1739 = vadd.f32 %v1669, %v1738
    %v1740 = vpop.f32.mrf.mxu0
    %1741 = vdwg.mxu0
    %1742 = vmatprep.subr.mxu0 0.0
    %1743 = vmatpush1.msra.mxu0 %v439
    %1744 = vmatprep.subr.mxu0 0.0
    %1745 = vmatpush1.msra.mxu0 %v434
    %1746 = vmatprep.subr.mxu0 0.0
    %1747 = vmatpush1.msra.mxu0 %v429
    %1748 = vmatprep.subr.mxu0 0.0
    %1749 = vmatpush1.msra.mxu0 %v424
    %1750 = vmatprep.subr.mxu0 0.0
    %1751 = vmatpush1.msra.mxu0 %v419
    %1752 = vmatprep.subr.mxu0 0.0
    %1753 = vmatpush1.msra.mxu0 %v414
    %1754 = vmatprep.subr.mxu0 0.0
    %1755 = vmatpush1.msra.mxu0 %v409
    %1756 = vmatprep.subr.mxu0 0.0
    %1757 = vmatpush1.msra.mxu0 %v404
    %1758 = vmatprep.subr.mxu0 0.0
    %1759 = vmatpush1.msra.mxu0 %v399
    %1760 = vmatprep.subr.mxu0 0.0
    %1761 = vmatpush1.msra.mxu0 %v394
    %1762 = vmatprep.subr.mxu0 0.0
    %1763 = vmatpush1.msra.mxu0 %v389
    %1764 = vmatprep.subr.mxu0 0.0
    %1765 = vmatpush1.msra.mxu0 %v384
    %1766 = vmatprep.subr.mxu0 0.0
    %1767 = vmatpush1.msra.mxu0 %v379
    %1768 = vmatprep.subr.mxu0 0.0
    %1769 = vmatpush1.msra.mxu0 %v374
    %1770 = vmatprep.subr.mxu0 0.0
    %1771 = vmatpush1.msra.mxu0 %v369
    %1772 = vmatprep.subr.mxu0 0.0
    %1773 = vmatpush1.msra.mxu0 %v364
    %1774 = vmatprep.subr.mxu0 0.0
    %1775 = vmatpush2.msra.mxu0 %v519
    %1776 = vmatprep.subr.mxu0 0.0
    %1777 = vmatpush2.msra.mxu0 %v514
    %1778 = vmatprep.subr.mxu0 0.0
    %1779 = vmatpush2.msra.mxu0 %v509
    %1780 = vmatprep.subr.mxu0 0.0
    %1781 = vmatpush2.msra.mxu0 %v504
    %1782 = vmatprep.subr.mxu0 0.0
    %1783 = vmatpush2.msra.mxu0 %v499
    %1784 = vmatprep.subr.mxu0 0.0
    %1785 = vmatpush2.msra.mxu0 %v494
    %1786 = vmatprep.subr.mxu0 0.0
    %1787 = vmatpush2.msra.mxu0 %v489
    %1788 = vmatprep.subr.mxu0 0.0
    %1789 = vmatpush2.msra.mxu0 %v484
    %1790 = vmatprep.subr.mxu0 0.0
    %1791 = vmatpush2.msra.mxu0 %v479
    %1792 = vmatprep.subr.mxu0 0.0
    %1793 = vmatpush2.msra.mxu0 %v474
    %1794 = vmatprep.subr.mxu0 0.0
    %1795 = vmatpush2.msra.mxu0 %v469
    %1796 = vmatprep.subr.mxu0 0.0
    %1797 = vmatpush2.msra.mxu0 %v464
    %1798 = vmatprep.subr.mxu0 0.0
    %1799 = vmatpush2.msra.mxu0 %v459
    %1800 = vmatprep.subr.mxu0 0.0
    %1801 = vmatpush2.msra.mxu0 %v454
    %1802 = vmatprep.subr.mxu0 0.0
    %1803 = vmatpush2.msra.mxu0 %v449
    %1804 = vmatprep.subr.mxu0 0.0
    %1805 = vmatpush2.msra.mxu0 %v444
    %1806 = vmatprep.mubr.f32.mxu0 %v865
    %1807 = vmatmul.mubr.f32.gmra.mxu0 %v861
    %v1808 = vpop.f32.mrf.mxu0
    %v1809 = vadd.f32 %v1739, %v1808
    %v1810 = vpop.f32.mrf.mxu0
    %1811 = vdwg.mxu0
    %1812 = vmatprep.subr.mxu0 0.0
    %1813 = vmatpush1.msra.mxu0 %v599
    %1814 = vmatprep.subr.mxu0 0.0
    %1815 = vmatpush1.msra.mxu0 %v594
    %1816 = vmatprep.subr.mxu0 0.0
    %1817 = vmatpush1.msra.mxu0 %v589
    %1818 = vmatprep.subr.mxu0 0.0
    %1819 = vmatpush1.msra.mxu0 %v584
    %1820 = vmatprep.subr.mxu0 0.0
    %1821 = vmatpush1.msra.mxu0 %v579
    %1822 = vmatprep.subr.mxu0 0.0
    %1823 = vmatpush1.msra.mxu0 %v574
    %1824 = vmatprep.subr.mxu0 0.0
    %1825 = vmatpush1.msra.mxu0 %v569
    %1826 = vmatprep.subr.mxu0 0.0
    %1827 = vmatpush1.msra.mxu0 %v564
    %1828 = vmatprep.subr.mxu0 0.0
    %1829 = vmatpush1.msra.mxu0 %v559
    %1830 = vmatprep.subr.mxu0 0.0
    %1831 = vmatpush1.msra.mxu0 %v554
    %1832 = vmatprep.subr.mxu0 0.0
    %1833 = vmatpush1.msra.mxu0 %v549
    %1834 = vmatprep.subr.mxu0 0.0
    %1835 = vmatpush1.msra.mxu0 %v544
    %1836 = vmatprep.subr.mxu0 0.0
    %1837 = vmatpush1.msra.mxu0 %v539
    %1838 = vmatprep.subr.mxu0 0.0
    %1839 = vmatpush1.msra.mxu0 %v534
    %1840 = vmatprep.subr.mxu0 0.0
    %1841 = vmatpush1.msra.mxu0 %v529
    %1842 = vmatprep.subr.mxu0 0.0
    %1843 = vmatpush1.msra.mxu0 %v524
    %1844 = vmatprep.subr.mxu0 0.0
    %1845 = vmatpush2.msra.mxu0 %v679
    %1846 = vmatprep.subr.mxu0 0.0
    %1847 = vmatpush2.msra.mxu0 %v674
    %1848 = vmatprep.subr.mxu0 0.0
    %1849 = vmatpush2.msra.mxu0 %v669
    %1850 = vmatprep.subr.mxu0 0.0
    %1851 = vmatpush2.msra.mxu0 %v664
    %1852 = vmatprep.subr.mxu0 0.0
    %1853 = vmatpush2.msra.mxu0 %v659
    %1854 = vmatprep.subr.mxu0 0.0
    %1855 = vmatpush2.msra.mxu0 %v654
    %1856 = vmatprep.subr.mxu0 0.0
    %1857 = vmatpush2.msra.mxu0 %v649
    %1858 = vmatprep.subr.mxu0 0.0
    %1859 = vmatpush2.msra.mxu0 %v644
    %1860 = vmatprep.subr.mxu0 0.0
    %1861 = vmatpush2.msra.mxu0 %v639
    %1862 = vmatprep.subr.mxu0 0.0
    %1863 = vmatpush2.msra.mxu0 %v634
    %1864 = vmatprep.subr.mxu0 0.0
    %1865 = vmatpush2.msra.mxu0 %v629
    %1866 = vmatprep.subr.mxu0 0.0
    %1867 = vmatpush2.msra.mxu0 %v624
    %1868 = vmatprep.subr.mxu0 0.0
    %1869 = vmatpush2.msra.mxu0 %v619
    %1870 = vmatprep.subr.mxu0 0.0
    %1871 = vmatpush2.msra.mxu0 %v614
    %1872 = vmatprep.subr.mxu0 0.0
    %1873 = vmatpush2.msra.mxu0 %v609
    %1874 = vmatprep.subr.mxu0 0.0
    %1875 = vmatpush2.msra.mxu0 %v604
    %1876 = vmatprep.mubr.f32.mxu0 %v873
    %1877 = vmatmul.mubr.f32.gmra.mxu0 %v869
    %v1878 = vpop.f32.mrf.mxu0
    %v1879 = vadd.f32 %v1809, %v1878
    %v1880 = vpop.f32.mrf.mxu0
    %1881 = vdwg.mxu0
    %1882 = vmatprep.subr.mxu0 0.0
    %1883 = vmatpush1.msra.mxu0 %v759
    %1884 = vmatprep.subr.mxu0 0.0
    %1885 = vmatpush1.msra.mxu0 %v754
    %1886 = vmatprep.subr.mxu0 0.0
    %1887 = vmatpush1.msra.mxu0 %v749
    %1888 = vmatprep.subr.mxu0 0.0
    %1889 = vmatpush1.msra.mxu0 %v744
    %1890 = vmatprep.subr.mxu0 0.0
    %1891 = vmatpush1.msra.mxu0 %v739
    %1892 = vmatprep.subr.mxu0 0.0
    %1893 = vmatpush1.msra.mxu0 %v734
    %1894 = vmatprep.subr.mxu0 0.0
    %1895 = vmatpush1.msra.mxu0 %v729
    %1896 = vmatprep.subr.mxu0 0.0
    %1897 = vmatpush1.msra.mxu0 %v724
    %1898 = vmatprep.subr.mxu0 0.0
    %1899 = vmatpush1.msra.mxu0 %v719
    %1900 = vmatprep.subr.mxu0 0.0
    %1901 = vmatpush1.msra.mxu0 %v714
    %1902 = vmatprep.subr.mxu0 0.0
    %1903 = vmatpush1.msra.mxu0 %v709
    %1904 = vmatprep.subr.mxu0 0.0
    %1905 = vmatpush1.msra.mxu0 %v704
    %1906 = vmatprep.subr.mxu0 0.0
    %1907 = vmatpush1.msra.mxu0 %v699
    %1908 = vmatprep.subr.mxu0 0.0
    %1909 = vmatpush1.msra.mxu0 %v694
    %1910 = vmatprep.subr.mxu0 0.0
    %1911 = vmatpush1.msra.mxu0 %v689
    %1912 = vmatprep.subr.mxu0 0.0
    %1913 = vmatpush1.msra.mxu0 %v684
    %1914 = vmatprep.subr.mxu0 0.0
    %1915 = vmatpush2.msra.mxu0 %v839
    %1916 = vmatprep.subr.mxu0 0.0
    %1917 = vmatpush2.msra.mxu0 %v834
    %1918 = vmatprep.subr.mxu0 0.0
    %1919 = vmatpush2.msra.mxu0 %v829
    %1920 = vmatprep.subr.mxu0 0.0
    %1921 = vmatpush2.msra.mxu0 %v824
    %1922 = vmatprep.subr.mxu0 0.0
    %1923 = vmatpush2.msra.mxu0 %v819
    %1924 = vmatprep.subr.mxu0 0.0
    %1925 = vmatpush2.msra.mxu0 %v814
    %1926 = vmatprep.subr.mxu0 0.0
    %1927 = vmatpush2.msra.mxu0 %v809
    %1928 = vmatprep.subr.mxu0 0.0
    %1929 = vmatpush2.msra.mxu0 %v804
    %1930 = vmatprep.subr.mxu0 0.0
    %1931 = vmatpush2.msra.mxu0 %v799
    %1932 = vmatprep.subr.mxu0 0.0
    %1933 = vmatpush2.msra.mxu0 %v794
    %1934 = vmatprep.subr.mxu0 0.0
    %1935 = vmatpush2.msra.mxu0 %v789
    %1936 = vmatprep.subr.mxu0 0.0
    %1937 = vmatpush2.msra.mxu0 %v784
    %1938 = vmatprep.subr.mxu0 0.0
    %1939 = vmatpush2.msra.mxu0 %v779
    %1940 = vmatprep.subr.mxu0 0.0
    %1941 = vmatpush2.msra.mxu0 %v774
    %1942 = vmatprep.subr.mxu0 0.0
    %1943 = vmatpush2.msra.mxu0 %v769
    %1944 = vmatprep.subr.mxu0 0.0
    %1945 = vmatpush2.msra.mxu0 %v764
    %1946 = vmatprep.mubr.f32.mxu0 %v881
    %1947 = vmatmul.mubr.f32.gmra.mxu0 %v877
    %v1948 = vpop.f32.mrf.mxu0
    %v1949 = vadd.f32 %v1879, %v1948
    %v1950 = vpop.f32.mrf.mxu0
    %1951 = vdwg.mxu0
    %v1957 = vcombine.low %v1243, %v1245
    %v1958 = vcombine.low %v1598, %v1600
    %v1960 = vunpack.c.l.s4 1966171168
    %v1961 = vunpack.c.0.s8 %v1960
    %v1962 = vlaneseq
    %v1963 = vshrl.u32 %v1962, 7
    %v1964 = vsub.s32 %v1961, %v1963
    %v1965 = vrot.slane %v1957, %v1964
    %v1967 = vunpack.c.l.s4 1966171168
    %v1968 = vunpack.c.0.s8 %v1967
    %v1969 = vlaneseq
    %v1970 = vshrl.u32 %v1969, 7
    %v1971 = vsub.s32 %v1968, %v1970
    %v1972 = vrot.slane %v1958, %v1971
    %v1974 = vunpack.c.l.s4 1966171168
    %v1975 = vunpack.c.0.s8 %v1974
    %v1976 = vlaneseq
    %v1977 = vshrl.u32 %v1976, 7
    %v1978 = vsub.s32 %v1975, %v1977
    %v1979 = vrot.slane %v1949, %v1978
    %v1980 = vcombine.low %v1965, %v1972
    %v1982 = vunpack.c.l.s4 1966171168
    %v1983 = vunpack.c.0.s8 %v1982
    %v1984 = vlaneseq
    %v1985 = vshrl.u32 %v1984, 7
    %v1986 = vsub.s32 %v1983, %v1985
    %v1987 = vrot.slane %v1980, %v1986
    %v1989 = vunpack.c.l.s4 1966171168
    %v1990 = vunpack.c.0.s8 %v1989
    %v1991 = vlaneseq
    %v1992 = vshrl.u32 %v1991, 7
    %v1993 = vsub.s32 %v1990, %v1992
    %v1994 = vrot.slane %v1979, %v1993
    %v1995 = vcombine.low %v1987, %v1994
    %v1997 = vlaneseq
    %vm1998 = vcmp.ge.s32.totalorder %v1997, 0
    %vm1999 = vcmp.lt.s32.totalorder %v1997, 640
    %vm2000 = vmand %vm1998, %vm1999
    %2001 = vst.msk [vmem:[#allocation7] sm:$0x1f] %vm2000, %v1995
    // Predicated region
    $region18: #{tpu_custom_call.1} parent=1 // pred_check
      _
    $region19: #{tpu_custom_call.1} parent=1 // pred_check_branch
      %2003 = sbr.rel (0) target = $region21
    $region20: #{tpu_custom_call.1} parent=1 // pred_region
      %s2005 = ssub.s32 80, 80
      %2006 = vsyncadd [#allocation4], %s2005
      %s2008 = sshll.u32 [#allocation7], 4
      %s2009 = int_to_ptr.vmem [resolvable:$true] %s2008
      %2011 = dma.vmem_to_hbm [thread:$0]  %s2009, 80, %s2, [#allocation4]
    $region21: #{tpu_custom_call.1} parent=1 // pred_fallthru
      _
    // Predicated region
    $region22: #{tpu_custom_call.1} parent=1 // pred_check
      _
    $region23: #{tpu_custom_call.1} parent=1 // pred_check_branch
      %2013 = sbr.rel (0) target = $region25
    $region24: #{tpu_custom_call.1} parent=1 // pred_region
      %2014 = dma.done [#allocation4], 80
    $region25: #{tpu_custom_call.1} parent=1 // pred_fallthru
      _
    %2015 = vsyncpa [#allocation3], 1
    %2016 = vsyncpa [#allocation6], 1
    %2017 = vsyncpa [#allocation4], 1

</llo_original>
